<compile_context>
chip_gen: v6e
topology: v6e:2x2x1
jax: 0.10.0
libtpu: 0.0.40
codegen_flags: <defaults>
</compile_context>

<pallas_src>
import functools

import jax
import jax.numpy as jnp
from jax.experimental import pallas as pl
from jax.experimental.pallas import tpu as pltpu

BN_EPS = 1e-5
C_PAD = 128      # output-channel padding: lane-dense stores + full MXU N utilization
TM_MAX = 512     # M-tile (rows of N*OH*OW) for large inputs


def _round_up(x, m):
    return (x + m - 1) // m * m


# ----------------------------- Pallas kernels ------------------------------ #

def _conv_mm_kernel(x_ref, w_ref, bias_ref, o_ref, *, apply_relu):
    """One M-tile of (im2col @ folded-BN weight) + bias [+ ReLU].

    Full reduction (K) in a single step: bf16 operands, f32 MXU accumulation.
    """
    y = jnp.dot(x_ref[...], w_ref[...], preferred_element_type=jnp.float32)
    y = y + bias_ref[...]
    if apply_relu:
        y = jnp.maximum(y, 0.0)
    o_ref[...] = y.astype(o_ref.dtype)


def _head_kernel(feat_ref, w_ref, b_ref, o_ref):
    """Global average pool over the flattened spatial axis + Linear classifier."""
    pooled = jnp.mean(feat_ref[...].astype(jnp.float32), axis=1)      # (N, C)
    o_ref[...] = (
        jnp.dot(pooled, w_ref[...], preferred_element_type=jnp.float32) + b_ref[...]
    )


# ------------------------------ JAX glue ----------------------------------- #

def _im2col(x, kh, kw, stride, pad):
    """x: (N,H,W,C) -> (N*OH*OW, KH*KW*C) patch matrix (bf16), plus (OH, OW)."""
    n, h, w, c = x.shape
    xp = jnp.pad(x, ((0, 0), (pad, pad), (pad, pad), (0, 0)))
    oh = (h + 2 * pad - kh) // stride + 1
    ow = (w + 2 * pad - kw) // stride + 1
    cols = [
        xp[:, i:i + stride * oh:stride, j:j + stride * ow:stride, :]
        for i in range(kh) for j in range(kw)
    ]
    patches = jnp.concatenate(cols, axis=-1)          # (N, OH, OW, KH*KW*C)
    return patches.reshape(n * oh * ow, kh * kw * c), oh, ow


def conv_bn_relu(x, w, scale, bias, *, stride, pad, apply_relu=True):
    """x: (N,H,W,Cc) bf16 with Cc >= logical Cin (padded channels are zero);
    w: (KH,KW,Cin,Cout); scale/bias: (Cout,) folded BN affine.
    Returns (N,OH,OW,C_PAD) bf16 with logical channels in [:Cout], zeros after."""
    n = x.shape[0]
    c_carried = x.shape[-1]
    kh, kw, w_cin, cout = w.shape

    # Only feed the *logical* input channels to the im2col / matmul (the carried tensor
    # may be lane-padded to C_PAD); this shrinks K and the patch-matrix HBM traffic.
    x_in = x[..., :w_cin] if c_carried != w_cin else x

    # Fold the BN scale into the conv weight (per output channel) and pad Cout to C_PAD
    # for a lane-dense output.  Zero weight columns / zero bias keep the padded output
    # channels exactly zero layer-to-layer.
    w_folded = (w * scale[None, None, None, :]).astype(jnp.bfloat16)
    w_p = jnp.zeros((kh, kw, w_cin, C_PAD), jnp.bfloat16).at[..., :cout].set(w_folded)
    w2 = w_p.reshape(kh * kw * w_cin, C_PAD)
    bias_p = jnp.zeros((1, C_PAD), jnp.float32).at[0, :cout].set(bias)

    patches, oh, ow = _im2col(x_in, kh, kw, stride, pad)   # (M, K) bf16
    m, kdim = patches.shape
    tm = TM_MAX if m >= TM_MAX else _round_up(m, 8)
    mp = _round_up(m, tm)
    if mp != m:
        patches = jnp.pad(patches, ((0, mp - m), (0, 0)))

    cost = pl.CostEstimate(
        flops=2 * mp * kdim * C_PAD,
        transcendentals=0,
        bytes_accessed=2 * (mp * kdim + kdim * C_PAD + mp * C_PAD) + 4 * C_PAD,
    )
    out = pl.pallas_call(
        functools.partial(_conv_mm_kernel, apply_relu=apply_relu),
        out_shape=jax.ShapeDtypeStruct((mp, C_PAD), jnp.bfloat16),
        grid=(mp // tm,),
        in_specs=[
            pl.BlockSpec((tm, kdim), lambda i: (i, 0)),      # patch rows, full K
            pl.BlockSpec((kdim, C_PAD), lambda i: (0, 0)),   # full folded weight, constant
            pl.BlockSpec((1, C_PAD), lambda i: (0, 0)),      # folded conv-bias + BN shift
        ],
        out_specs=pl.BlockSpec((tm, C_PAD), lambda i: (i, 0)),
        compiler_params=pltpu.CompilerParams(
            dimension_semantics=("parallel",),               # megacore-shardable on v7x
            vmem_limit_bytes=32 * 1024 * 1024,               # > v5e's 16 MiB scoped default
        ),
        cost_estimate=cost,
    )(patches, w2, bias_p)
    return out[:m].reshape(n, oh, ow, C_PAD)


def classifier_head(feat, w_fc, b_fc):
    """feat: (N,H,W,C_PAD) bf16; w_fc: (C, n_classes); b_fc: (n_classes,) -> (N, n_classes)."""
    n, h, w, c = feat.shape
    n_classes = w_fc.shape[1]
    feat2 = feat.reshape(n, h * w, c)
    # Pad the class dimension to 128 lanes; padded feat channels are zero so zero weight
    # rows keep the result exact.  Slice back to the logical classes afterwards.
    w_p = jnp.zeros((c, C_PAD), jnp.float32).at[:w_fc.shape[0], :n_classes].set(w_fc)
    b_p = jnp.zeros((1, C_PAD), jnp.float32).at[0, :n_classes].set(b_fc)
    cost = pl.CostEstimate(
        flops=2 * n * c * C_PAD + n * h * w * c,
        transcendentals=0,
        bytes_accessed=2 * n * h * w * c + 4 * (c * C_PAD + C_PAD + n * C_PAD),
    )
    out = pl.pallas_call(
        _head_kernel,
        out_shape=jax.ShapeDtypeStruct((n, C_PAD), jnp.float32),
        in_specs=[pl.BlockSpec(memory_space=pltpu.MemorySpace.VMEM)] * 3,
        out_specs=pl.BlockSpec(memory_space=pltpu.MemorySpace.VMEM),
        compiler_params=pltpu.CompilerParams(vmem_limit_bytes=32 * 1024 * 1024),
        cost_estimate=cost,
    )(feat2, w_p, b_p)
    return out[:, :n_classes]


# --------------------------- parameter creation ----------------------------- #

def _conv_bn_params(key, cin, cout, ksize):
    k1, k2, k3, k4 = jax.random.split(key, 4)
    w = 0.05 * jax.random.normal(k1, (ksize, ksize, cin, cout), jnp.float32)
    b_conv = 0.05 * jax.random.normal(k2, (cout,), jnp.float32)
    gamma = 1.0 + 0.1 * jax.random.normal(k3, (cout,), jnp.float32)
    beta = 0.1 * jax.random.normal(k4, (cout,), jnp.float32)
    run_mean = jnp.zeros((cout,), jnp.float32)
    run_var = jnp.ones((cout,), jnp.float32)
    scale = gamma / jnp.sqrt(run_var + BN_EPS)          # folded BN scale
    bias = (b_conv - run_mean) * scale + beta           # folded conv-bias + BN shift
    return dict(w=w, scale=scale, bias=bias)


def init_params(key, layers=(32, 64, 128), n_input_channels=3, n_classes=6):
    keys = jax.random.split(key, 2 * len(layers) + 3)
    params = {"stem": _conv_bn_params(keys[0], n_input_channels, 32, 7), "blocks": []}
    c = 32
    for i, l in enumerate(layers):
        blk = {
            "conv1": _conv_bn_params(keys[1 + 2 * i], c, l, 3),
            "conv2": _conv_bn_params(keys[2 + 2 * i], l, l, 3),
        }
        params["blocks"].append(blk)
        c = l
    params["fc_w"] = 0.05 * jax.random.normal(keys[-2], (c, n_classes), jnp.float32)
    params["fc_b"] = 0.05 * jax.random.normal(keys[-1], (n_classes,), jnp.float32)
    return params


# ------------------------------ forward pass -------------------------------- #

def cnn_classifier_forward(params, x_nchw):
    x = jnp.transpose(x_nchw, (0, 2, 3, 1)).astype(jnp.bfloat16)  # NCHW -> NHWC bf16
    # Stem: Conv 7x7 s2 p3 + BN + ReLU
    x = conv_bn_relu(x, **params["stem"], stride=2, pad=3)
    # Blocks: (Conv3x3 s2 + BN + ReLU) -> (Conv3x3 s1 + BN + ReLU)
    for blk in params["blocks"]:
        x = conv_bn_relu(x, **blk["conv1"], stride=2, pad=1)
        x = conv_bn_relu(x, **blk["conv2"], stride=1, pad=1)
    # Global average pool over H,W + Linear(c, 6)
    return classifier_head(x, params["fc_w"], params["fc_b"])


if __name__ == "__main__":
    key = jax.random.PRNGKey(0)
    pkey, xkey = jax.random.split(key)
    params = init_params(pkey)
    x = jax.random.normal(xkey, (2, 3, 16, 16), jnp.float32)  # NCHW, like the PyTorch module
    logits = jax.jit(cnn_classifier_forward)(params, x)
    jax.block_until_ready(logits)
    assert logits.shape == (2, 6) and logits.dtype == jnp.float32
    print("KERNEL_OK")
</pallas_src>

<mosaic_0001>
module attributes {stable_mosaic.version = 11 : i64} {
  func.func @_conv_mm_kernel(%arg0: i32, %arg1: memref<128x147xbf16, #tpu.memory_space<vmem>>, %arg2: memref<147x128xbf16, #tpu.memory_space<vmem>>, %arg3: memref<1x128xf32, #tpu.memory_space<vmem>>, %arg4: memref<128x128xbf16, #tpu.memory_space<vmem>>) attributes {dimension_semantics = [#tpu.dimension_semantics<parallel>], iteration_bounds = array<i64: 1>, scalar_prefetch = 0 : i64, scratch_operands = 0 : i64, tpu.core_type = #tpu.core_type<tc>, window_params = [{transform_indices = @transform_0, window_bounds = array<i64: 128, 147>}, {pipeline_mode = #tpu.pipeline_mode<synchronous>, transform_indices = @transform_1, window_bounds = array<i64: 147, 128>}, {pipeline_mode = #tpu.pipeline_mode<synchronous>, transform_indices = @transform_2, window_bounds = array<i64: 1, 128>}, {transform_indices = @transform_3, window_bounds = array<i64: 128, 128>}]} {
    %c0 = arith.constant 0 : index
    %c0_0 = arith.constant 0 : index
    %0 = vector.load %arg1[%c0, %c0_0] : memref<128x147xbf16, #tpu.memory_space<vmem>>, vector<128x147xbf16>
    %c0_1 = arith.constant 0 : index
    %c0_2 = arith.constant 0 : index
    %1 = vector.load %arg2[%c0_1, %c0_2] : memref<147x128xbf16, #tpu.memory_space<vmem>>, vector<147x128xbf16>
    %cst = arith.constant dense<0.000000e+00> : vector<128x128xf32>
    %2 = tpu.matmul %0, %1, %cst {dimension_numbers = #tpu.dot_dimension_numbers<[1], [0], [0], [1], [0, 0, 1, 1], [], []>} : vector<128x147xbf16>, vector<147x128xbf16>, vector<128x128xf32> -> vector<128x128xf32>
    %c0_3 = arith.constant 0 : index
    %c0_4 = arith.constant 0 : index
    %3 = vector.load %arg3[%c0_3, %c0_4] : memref<1x128xf32, #tpu.memory_space<vmem>>, vector<1x128xf32>
    %4 = vector.broadcast %3 : vector<1x128xf32> to vector<128x128xf32>
    %5 = arith.addf %2, %4 : vector<128x128xf32>
    %cst_5 = arith.constant 0.000000e+00 : f32
    %6 = vector.broadcast %cst_5 : f32 to vector<128x128xf32>
    %7 = arith.maximumf %5, %6 : vector<128x128xf32>
    %8 = arith.truncf %7 : vector<128x128xf32> to vector<128x128xbf16>
    %c0_6 = arith.constant 0 : index
    %c0_7 = arith.constant 0 : index
    %9 = vector.load %arg4[%c0_6, %c0_7] : memref<128x128xbf16, #tpu.memory_space<vmem>>, vector<128x128xbf16>
    tpu.vector_store %arg4[%c0_6, %c0_7], %8 {strides = array<i32>} : memref<128x128xbf16, #tpu.memory_space<vmem>>, vector<128x128xbf16>,
    return
  }
  func.func @transform_0(%arg0: i32) -> (i32, i32) {
    %c0_i32 = arith.constant 0 : i32
    %c0_i32_0 = arith.constant 0 : i32
    return %arg0, %c0_i32 : i32, i32
  }
  func.func @transform_1(%arg0: i32) -> (i32, i32) {
    %c0_i32 = arith.constant 0 : i32
    %c0_i32_0 = arith.constant 0 : i32
    %c0_i32_1 = arith.constant 0 : i32
    return %c0_i32, %c0_i32_0 : i32, i32
  }
  func.func @transform_2(%arg0: i32) -> (i32, i32) {
    %c0_i32 = arith.constant 0 : i32
    %c0_i32_0 = arith.constant 0 : i32
    %c0_i32_1 = arith.constant 0 : i32
    return %c0_i32, %c0_i32_0 : i32, i32
  }
  func.func @transform_3(%arg0: i32) -> (i32, i32) {
    %c0_i32 = arith.constant 0 : i32
    %c0_i32_0 = arith.constant 0 : i32
    return %arg0, %c0_i32 : i32, i32
  }
}

module attributes {stable_mosaic.version = 11 : i64} {
  func.func @_conv_mm_kernel(%arg0: i32, %arg1: memref<32x288xbf16, #tpu.memory_space<vmem>>, %arg2: memref<288x128xbf16, #tpu.memory_space<vmem>>, %arg3: memref<1x128xf32, #tpu.memory_space<vmem>>, %arg4: memref<32x128xbf16, #tpu.memory_space<vmem>>) attributes {dimension_semantics = [#tpu.dimension_semantics<parallel>], iteration_bounds = array<i64: 1>, scalar_prefetch = 0 : i64, scratch_operands = 0 : i64, tpu.core_type = #tpu.core_type<tc>, window_params = [{transform_indices = @transform_0, window_bounds = array<i64: 32, 288>}, {pipeline_mode = #tpu.pipeline_mode<synchronous>, transform_indices = @transform_1, window_bounds = array<i64: 288, 128>}, {pipeline_mode = #tpu.pipeline_mode<synchronous>, transform_indices = @transform_2, window_bounds = array<i64: 1, 128>}, {transform_indices = @transform_3, window_bounds = array<i64: 32, 128>}]} {
    %c0 = arith.constant 0 : index
    %c0_0 = arith.constant 0 : index
    %0 = vector.load %arg1[%c0, %c0_0] : memref<32x288xbf16, #tpu.memory_space<vmem>>, vector<32x288xbf16>
    %c0_1 = arith.constant 0 : index
    %c0_2 = arith.constant 0 : index
    %1 = vector.load %arg2[%c0_1, %c0_2] : memref<288x128xbf16, #tpu.memory_space<vmem>>, vector<288x128xbf16>
    %cst = arith.constant dense<0.000000e+00> : vector<32x128xf32>
    %2 = tpu.matmul %0, %1, %cst {dimension_numbers = #tpu.dot_dimension_numbers<[1], [0], [0], [1], [0, 0, 1, 1], [], []>} : vector<32x288xbf16>, vector<288x128xbf16>, vector<32x128xf32> -> vector<32x128xf32>
    %c0_3 = arith.constant 0 : index
    %c0_4 = arith.constant 0 : index
    %3 = vector.load %arg3[%c0_3, %c0_4] : memref<1x128xf32, #tpu.memory_space<vmem>>, vector<1x128xf32>
    %4 = vector.broadcast %3 : vector<1x128xf32> to vector<32x128xf32>
    %5 = arith.addf %2, %4 : vector<32x128xf32>
    %cst_5 = arith.constant 0.000000e+00 : f32
    %6 = vector.broadcast %cst_5 : f32 to vector<32x128xf32>
    %7 = arith.maximumf %5, %6 : vector<32x128xf32>
    %8 = arith.truncf %7 : vector<32x128xf32> to vector<32x128xbf16>
    %c0_6 = arith.constant 0 : index
    %c0_7 = arith.constant 0 : index
    %9 = vector.load %arg4[%c0_6, %c0_7] : memref<32x128xbf16, #tpu.memory_space<vmem>>, vector<32x128xbf16>
    tpu.vector_store %arg4[%c0_6, %c0_7], %8 {strides = array<i32>} : memref<32x128xbf16, #tpu.memory_space<vmem>>, vector<32x128xbf16>,
    return
  }
  func.func @transform_0(%arg0: i32) -> (i32, i32) {
    %c0_i32 = arith.constant 0 : i32
    %c0_i32_0 = arith.constant 0 : i32
    return %arg0, %c0_i32 : i32, i32
  }
  func.func @transform_1(%arg0: i32) -> (i32, i32) {
    %c0_i32 = arith.constant 0 : i32
    %c0_i32_0 = arith.constant 0 : i32
    %c0_i32_1 = arith.constant 0 : i32
    return %c0_i32, %c0_i32_0 : i32, i32
  }
  func.func @transform_2(%arg0: i32) -> (i32, i32) {
    %c0_i32 = arith.constant 0 : i32
    %c0_i32_0 = arith.constant 0 : i32
    %c0_i32_1 = arith.constant 0 : i32
    return %c0_i32, %c0_i32_0 : i32, i32
  }
  func.func @transform_3(%arg0: i32) -> (i32, i32) {
    %c0_i32 = arith.constant 0 : i32
    %c0_i32_0 = arith.constant 0 : i32
    return %arg0, %c0_i32 : i32, i32
  }
}

module attributes {stable_mosaic.version = 11 : i64} {
  func.func @_conv_mm_kernel(%arg0: i32, %arg1: memref<8x288xbf16, #tpu.memory_space<vmem>>, %arg2: memref<288x128xbf16, #tpu.memory_space<vmem>>, %arg3: memref<1x128xf32, #tpu.memory_space<vmem>>, %arg4: memref<8x128xbf16, #tpu.memory_space<vmem>>) attributes {dimension_semantics = [#tpu.dimension_semantics<parallel>], iteration_bounds = array<i64: 1>, scalar_prefetch = 0 : i64, scratch_operands = 0 : i64, tpu.core_type = #tpu.core_type<tc>, window_params = [{transform_indices = @transform_0, window_bounds = array<i64: 8, 288>}, {pipeline_mode = #tpu.pipeline_mode<synchronous>, transform_indices = @transform_1, window_bounds = array<i64: 288, 128>}, {pipeline_mode = #tpu.pipeline_mode<synchronous>, transform_indices = @transform_2, window_bounds = array<i64: 1, 128>}, {transform_indices = @transform_3, window_bounds = array<i64: 8, 128>}]} {
    %c0 = arith.constant 0 : index
    %c0_0 = arith.constant 0 : index
    %0 = vector.load %arg1[%c0, %c0_0] : memref<8x288xbf16, #tpu.memory_space<vmem>>, vector<8x288xbf16>
    %c0_1 = arith.constant 0 : index
    %c0_2 = arith.constant 0 : index
    %1 = vector.load %arg2[%c0_1, %c0_2] : memref<288x128xbf16, #tpu.memory_space<vmem>>, vector<288x128xbf16>
    %cst = arith.constant dense<0.000000e+00> : vector<8x128xf32>
    %2 = tpu.matmul %0, %1, %cst {dimension_numbers = #tpu.dot_dimension_numbers<[1], [0], [0], [1], [0, 0, 1, 1], [], []>} : vector<8x288xbf16>, vector<288x128xbf16>, vector<8x128xf32> -> vector<8x128xf32>
    %c0_3 = arith.constant 0 : index
    %c0_4 = arith.constant 0 : index
    %3 = vector.load %arg3[%c0_3, %c0_4] : memref<1x128xf32, #tpu.memory_space<vmem>>, vector<1x128xf32>
    %4 = vector.broadcast %3 : vector<1x128xf32> to vector<8x128xf32>
    %5 = arith.addf %2, %4 : vector<8x128xf32>
    %cst_5 = arith.constant 0.000000e+00 : f32
    %6 = vector.broadcast %cst_5 : f32 to vector<8x128xf32>
    %7 = arith.maximumf %5, %6 : vector<8x128xf32>
    %8 = arith.truncf %7 : vector<8x128xf32> to vector<8x128xbf16>
    %c0_6 = arith.constant 0 : index
    %c0_7 = arith.constant 0 : index
    %9 = vector.load %arg4[%c0_6, %c0_7] : memref<8x128xbf16, #tpu.memory_space<vmem>>, vector<8x128xbf16>
    tpu.vector_store %arg4[%c0_6, %c0_7], %8 {strides = array<i32>} : memref<8x128xbf16, #tpu.memory_space<vmem>>, vector<8x128xbf16>,
    return
  }
  func.func @transform_0(%arg0: i32) -> (i32, i32) {
    %c0_i32 = arith.constant 0 : i32
    %c0_i32_0 = arith.constant 0 : i32
    return %arg0, %c0_i32 : i32, i32
  }
  func.func @transform_1(%arg0: i32) -> (i32, i32) {
    %c0_i32 = arith.constant 0 : i32
    %c0_i32_0 = arith.constant 0 : i32
    %c0_i32_1 = arith.constant 0 : i32
    return %c0_i32, %c0_i32_0 : i32, i32
  }
  func.func @transform_2(%arg0: i32) -> (i32, i32) {
    %c0_i32 = arith.constant 0 : i32
    %c0_i32_0 = arith.constant 0 : i32
    %c0_i32_1 = arith.constant 0 : i32
    return %c0_i32, %c0_i32_0 : i32, i32
  }
  func.func @transform_3(%arg0: i32) -> (i32, i32) {
    %c0_i32 = arith.constant 0 : i32
    %c0_i32_0 = arith.constant 0 : i32
    return %arg0, %c0_i32 : i32, i32
  }
}

module attributes {stable_mosaic.version = 11 : i64} {
  func.func @_conv_mm_kernel(%arg0: i32, %arg1: memref<8x576xbf16, #tpu.memory_space<vmem>>, %arg2: memref<576x128xbf16, #tpu.memory_space<vmem>>, %arg3: memref<1x128xf32, #tpu.memory_space<vmem>>, %arg4: memref<8x128xbf16, #tpu.memory_space<vmem>>) attributes {dimension_semantics = [#tpu.dimension_semantics<parallel>], iteration_bounds = array<i64: 1>, scalar_prefetch = 0 : i64, scratch_operands = 0 : i64, tpu.core_type = #tpu.core_type<tc>, window_params = [{transform_indices = @transform_0, window_bounds = array<i64: 8, 576>}, {pipeline_mode = #tpu.pipeline_mode<synchronous>, transform_indices = @transform_1, window_bounds = array<i64: 576, 128>}, {pipeline_mode = #tpu.pipeline_mode<synchronous>, transform_indices = @transform_2, window_bounds = array<i64: 1, 128>}, {transform_indices = @transform_3, window_bounds = array<i64: 8, 128>}]} {
    %c0 = arith.constant 0 : index
    %c0_0 = arith.constant 0 : index
    %0 = vector.load %arg1[%c0, %c0_0] : memref<8x576xbf16, #tpu.memory_space<vmem>>, vector<8x576xbf16>
    %c0_1 = arith.constant 0 : index
    %c0_2 = arith.constant 0 : index
    %1 = vector.load %arg2[%c0_1, %c0_2] : memref<576x128xbf16, #tpu.memory_space<vmem>>, vector<576x128xbf16>
    %cst = arith.constant dense<0.000000e+00> : vector<8x128xf32>
    %2 = tpu.matmul %0, %1, %cst {dimension_numbers = #tpu.dot_dimension_numbers<[1], [0], [0], [1], [0, 0, 1, 1], [], []>} : vector<8x576xbf16>, vector<576x128xbf16>, vector<8x128xf32> -> vector<8x128xf32>
    %c0_3 = arith.constant 0 : index
    %c0_4 = arith.constant 0 : index
    %3 = vector.load %arg3[%c0_3, %c0_4] : memref<1x128xf32, #tpu.memory_space<vmem>>, vector<1x128xf32>
    %4 = vector.broadcast %3 : vector<1x128xf32> to vector<8x128xf32>
    %5 = arith.addf %2, %4 : vector<8x128xf32>
    %cst_5 = arith.constant 0.000000e+00 : f32
    %6 = vector.broadcast %cst_5 : f32 to vector<8x128xf32>
    %7 = arith.maximumf %5, %6 : vector<8x128xf32>
    %8 = arith.truncf %7 : vector<8x128xf32> to vector<8x128xbf16>
    %c0_6 = arith.constant 0 : index
    %c0_7 = arith.constant 0 : index
    %9 = vector.load %arg4[%c0_6, %c0_7] : memref<8x128xbf16, #tpu.memory_space<vmem>>, vector<8x128xbf16>
    tpu.vector_store %arg4[%c0_6, %c0_7], %8 {strides = array<i32>} : memref<8x128xbf16, #tpu.memory_space<vmem>>, vector<8x128xbf16>,
    return
  }
  func.func @transform_0(%arg0: i32) -> (i32, i32) {
    %c0_i32 = arith.constant 0 : i32
    %c0_i32_0 = arith.constant 0 : i32
    return %arg0, %c0_i32 : i32, i32
  }
  func.func @transform_1(%arg0: i32) -> (i32, i32) {
    %c0_i32 = arith.constant 0 : i32
    %c0_i32_0 = arith.constant 0 : i32
    %c0_i32_1 = arith.constant 0 : i32
    return %c0_i32, %c0_i32_0 : i32, i32
  }
  func.func @transform_2(%arg0: i32) -> (i32, i32) {
    %c0_i32 = arith.constant 0 : i32
    %c0_i32_0 = arith.constant 0 : i32
    %c0_i32_1 = arith.constant 0 : i32
    return %c0_i32, %c0_i32_0 : i32, i32
  }
  func.func @transform_3(%arg0: i32) -> (i32, i32) {
    %c0_i32 = arith.constant 0 : i32
    %c0_i32_0 = arith.constant 0 : i32
    return %arg0, %c0_i32 : i32, i32
  }
}

module attributes {stable_mosaic.version = 11 : i64} {
  func.func @_conv_mm_kernel(%arg0: i32, %arg1: memref<8x1152xbf16, #tpu.memory_space<vmem>>, %arg2: memref<1152x128xbf16, #tpu.memory_space<vmem>>, %arg3: memref<1x128xf32, #tpu.memory_space<vmem>>, %arg4: memref<8x128xbf16, #tpu.memory_space<vmem>>) attributes {dimension_semantics = [#tpu.dimension_semantics<parallel>], iteration_bounds = array<i64: 1>, scalar_prefetch = 0 : i64, scratch_operands = 0 : i64, tpu.core_type = #tpu.core_type<tc>, window_params = [{transform_indices = @transform_0, window_bounds = array<i64: 8, 1152>}, {pipeline_mode = #tpu.pipeline_mode<synchronous>, transform_indices = @transform_1, window_bounds = array<i64: 1152, 128>}, {pipeline_mode = #tpu.pipeline_mode<synchronous>, transform_indices = @transform_2, window_bounds = array<i64: 1, 128>}, {transform_indices = @transform_3, window_bounds = array<i64: 8, 128>}]} {
    %c0 = arith.constant 0 : index
    %c0_0 = arith.constant 0 : index
    %0 = vector.load %arg1[%c0, %c0_0] : memref<8x1152xbf16, #tpu.memory_space<vmem>>, vector<8x1152xbf16>
    %c0_1 = arith.constant 0 : index
    %c0_2 = arith.constant 0 : index
    %1 = vector.load %arg2[%c0_1, %c0_2] : memref<1152x128xbf16, #tpu.memory_space<vmem>>, vector<1152x128xbf16>
    %cst = arith.constant dense<0.000000e+00> : vector<8x128xf32>
    %2 = tpu.matmul %0, %1, %cst {dimension_numbers = #tpu.dot_dimension_numbers<[1], [0], [0], [1], [0, 0, 1, 1], [], []>} : vector<8x1152xbf16>, vector<1152x128xbf16>, vector<8x128xf32> -> vector<8x128xf32>
    %c0_3 = arith.constant 0 : index
    %c0_4 = arith.constant 0 : index
    %3 = vector.load %arg3[%c0_3, %c0_4] : memref<1x128xf32, #tpu.memory_space<vmem>>, vector<1x128xf32>
    %4 = vector.broadcast %3 : vector<1x128xf32> to vector<8x128xf32>
    %5 = arith.addf %2, %4 : vector<8x128xf32>
    %cst_5 = arith.constant 0.000000e+00 : f32
    %6 = vector.broadcast %cst_5 : f32 to vector<8x128xf32>
    %7 = arith.maximumf %5, %6 : vector<8x128xf32>
    %8 = arith.truncf %7 : vector<8x128xf32> to vector<8x128xbf16>
    %c0_6 = arith.constant 0 : index
    %c0_7 = arith.constant 0 : index
    %9 = vector.load %arg4[%c0_6, %c0_7] : memref<8x128xbf16, #tpu.memory_space<vmem>>, vector<8x128xbf16>
    tpu.vector_store %arg4[%c0_6, %c0_7], %8 {strides = array<i32>} : memref<8x128xbf16, #tpu.memory_space<vmem>>, vector<8x128xbf16>,
    return
  }
  func.func @transform_0(%arg0: i32) -> (i32, i32) {
    %c0_i32 = arith.constant 0 : i32
    %c0_i32_0 = arith.constant 0 : i32
    return %arg0, %c0_i32 : i32, i32
  }
  func.func @transform_1(%arg0: i32) -> (i32, i32) {
    %c0_i32 = arith.constant 0 : i32
    %c0_i32_0 = arith.constant 0 : i32
    %c0_i32_1 = arith.constant 0 : i32
    return %c0_i32, %c0_i32_0 : i32, i32
  }
  func.func @transform_2(%arg0: i32) -> (i32, i32) {
    %c0_i32 = arith.constant 0 : i32
    %c0_i32_0 = arith.constant 0 : i32
    %c0_i32_1 = arith.constant 0 : i32
    return %c0_i32, %c0_i32_0 : i32, i32
  }
  func.func @transform_3(%arg0: i32) -> (i32, i32) {
    %c0_i32 = arith.constant 0 : i32
    %c0_i32_0 = arith.constant 0 : i32
    return %arg0, %c0_i32 : i32, i32
  }
}

module attributes {stable_mosaic.version = 11 : i64} {
  func.func @_head_kernel(%arg0: memref<2x1x128xbf16, #tpu.memory_space<vmem>>, %arg1: memref<128x128xf32, #tpu.memory_space<vmem>>, %arg2: memref<1x128xf32, #tpu.memory_space<vmem>>, %arg3: memref<2x128xf32, #tpu.memory_space<vmem>>) attributes {dimension_semantics = [], scalar_prefetch = 0 : i64, scratch_operands = 0 : i64, tpu.core_type = #tpu.core_type<tc>} {
    %c0 = arith.constant 0 : index
    %c0_0 = arith.constant 0 : index
    %c0_1 = arith.constant 0 : index
    %0 = vector.load %arg0[%c0, %c0_0, %c0_1] : memref<2x1x128xbf16, #tpu.memory_space<vmem>>, vector<2x1x128xbf16>
    %1 = arith.extf %0 : vector<2x1x128xbf16> to vector<2x1x128xf32>
    %cst = arith.constant dense<0.000000e+00> : vector<2x128xf32>
    %2 = vector.multi_reduction <add>, %1, %cst [1] : vector<2x1x128xf32> to vector<2x128xf32>
    %cst_2 = arith.constant 1.000000e+00 : f32
    %3 = vector.broadcast %cst_2 : f32 to vector<2x128xf32>
    %4 = arith.divf %2, %3 : vector<2x128xf32>
    %c0_3 = arith.constant 0 : index
    %c0_4 = arith.constant 0 : index
    %5 = vector.load %arg1[%c0_3, %c0_4] : memref<128x128xf32, #tpu.memory_space<vmem>>, vector<128x128xf32>
    %cst_5 = arith.constant dense<0.000000e+00> : vector<2x128xf32>
    %6 = tpu.matmul %4, %5, %cst_5 {dimension_numbers = #tpu.dot_dimension_numbers<[1], [0], [0], [1], [0, 0, 1, 1], [], []>} : vector<2x128xf32>, vector<128x128xf32>, vector<2x128xf32> -> vector<2x128xf32>
    %c0_6 = arith.constant 0 : index
    %c0_7 = arith.constant 0 : index
    %7 = vector.load %arg2[%c0_6, %c0_7] : memref<1x128xf32, #tpu.memory_space<vmem>>, vector<1x128xf32>
    %8 = vector.broadcast %7 : vector<1x128xf32> to vector<2x128xf32>
    %9 = arith.addf %6, %8 : vector<2x128xf32>
    %c0_8 = arith.constant 0 : index
    %c0_9 = arith.constant 0 : index
    %10 = vector.load %arg3[%c0_8, %c0_9] : memref<2x128xf32, #tpu.memory_space<vmem>>, vector<2x128xf32>
    tpu.vector_store %arg3[%c0_8, %c0_9], %9 {strides = array<i32>} : memref<2x128xf32, #tpu.memory_space<vmem>>, vector<2x128xf32>,
    return
  }
}

</mosaic_0001>

<llo_original>
// kernel: cnn_classifier_forward.8
$region0: #{cnn_classifier_forward.8}
  #allocation0 [shape = 'u32[]', space=smem, size = 0x4, offset = 0x4, fixed_abs, tag = 'smem constant byte address 0x4 - core index']
  #allocation1 [shape = 'u32[144,128]{1,0:T(1,128)}', space=vmem, size = 0x12000, scoped, tag = 'internal scratch']
  %s0 = inlined_call_operand.vmem [shape: bf16[128,147], index: 0, kind: input, shape index: {}]
  %s1 = inlined_call_operand.vmem [shape: bf16[147,128], index: 1, kind: input, shape index: {}]
  %s2 = inlined_call_operand.vmem [shape: f32[1,128], index: 2, kind: input, shape index: {}]
  %s3 = inlined_call_operand.vmem [shape: bf16[128,128], index: 3, kind: output, shape index: {}]
  %s4 = sld [smem:[#allocation0]]
  $region22: #{cnn_classifier_forward.8} parent=0
    _
  %s6 = ssub.s32 1, %s4
  %s7 = scalar_select 0, %s6, %s4
  // Predicated region
  $region2: #{cnn_classifier_forward.8} parent=0 // pred_check
    _
  $region3: #{cnn_classifier_forward.8} parent=0 // pred_check_branch
    %9 = sbr.rel (0) target = $region5
  $region4: #{cnn_classifier_forward.8} parent=0 // pred_region
    _
  $region5: #{cnn_classifier_forward.8} parent=0 // pred_fallthru
    _
  // Predicated region
  $region6: #{cnn_classifier_forward.8} parent=0 // pred_check
    _
  $region7: #{cnn_classifier_forward.8} parent=0 // pred_check_branch
    %11 = sbr.rel (0) target = $region9
  $region8: #{cnn_classifier_forward.8} parent=0 // pred_region
    _
  $region9: #{cnn_classifier_forward.8} parent=0 // pred_fallthru
    _
  // Predicated region
  $region10: #{cnn_classifier_forward.8} parent=0 // pred_check
    _
  $region11: #{cnn_classifier_forward.8} parent=0 // pred_check_branch
    %13 = sbr.rel (0) target = $region13
  $region12: #{cnn_classifier_forward.8} parent=0 // pred_region
    _
  $region13: #{cnn_classifier_forward.8} parent=0 // pred_fallthru
    _
  %v15 = vld [vmem:[%s0] sm:$0xff]
  %v16 = vld [vmem:[%s0 + $0x8] sm:$0xff]
  %v17 = vld [vmem:[%s0 + $0x10] sm:$0xff]
  %v18 = vld [vmem:[%s0 + $0x18] sm:$0xff]
  %v19 = vld [vmem:[%s0 + $0x20] sm:$0xff]
  %v20 = vld [vmem:[%s0 + $0x28] sm:$0xff]
  %v21 = vld [vmem:[%s0 + $0x30] sm:$0xff]
  %v22 = vld [vmem:[%s0 + $0x38] sm:$0xff]
  %v23 = vld [vmem:[%s0 + $0x40] sm:$0xff]
  %v24 = vld [vmem:[%s0 + $0x48] sm:$0xff]
  %v25 = vld [vmem:[%s0 + $0x50] sm:$0xff]
  %v26 = vld [vmem:[%s0 + $0x58] sm:$0xff]
  %v27 = vld [vmem:[%s0 + $0x60] sm:$0xff]
  %v28 = vld [vmem:[%s0 + $0x68] sm:$0xff]
  %v29 = vld [vmem:[%s0 + $0x70] sm:$0xff]
  %v30 = vld [vmem:[%s0 + $0x78] sm:$0xff]
  %v31 = vld [vmem:[%s1] sm:$0xf]
  %v32 = vld [vmem:[%s1 + $0x4] sm:$0xf]
  %v33 = vld [vmem:[%s1 + $0x8] sm:$0xf]
  %v34 = vld [vmem:[%s1 + $0xc] sm:$0xf]
  %v35 = vld [vmem:[%s1 + $0x10] sm:$0xf]
  %v36 = vld [vmem:[%s1 + $0x14] sm:$0xf]
  %v37 = vld [vmem:[%s1 + $0x18] sm:$0xf]
  %v38 = vld [vmem:[%s1 + $0x1c] sm:$0xf]
  %v39 = vld [vmem:[%s1 + $0x20] sm:$0xf]
  %v40 = vld [vmem:[%s1 + $0x24] sm:$0xf]
  %v41 = vld [vmem:[%s1 + $0x28] sm:$0xf]
  %v42 = vld [vmem:[%s1 + $0x2c] sm:$0xf]
  %v43 = vld [vmem:[%s1 + $0x30] sm:$0xf]
  %v44 = vld [vmem:[%s1 + $0x34] sm:$0xf]
  %v45 = vld [vmem:[%s1 + $0x38] sm:$0xf]
  %v46 = vld [vmem:[%s1 + $0x3c] sm:$0xf]
  %v47 = vld [vmem:[%s1 + $0x40] sm:$0xf]
  %v48 = vld [vmem:[%s1 + $0x44] sm:$0xf]
  %v49 = vld [vmem:[%s1 + $0x48] sm:$0x3]
  %v50 = vld [vmem:[%s2] sm:$0x1]
  %v52 = vlaneseq
  %v53 = vshrl.u32 %v52, 7
  %v54 = vsub.s32 0, %v53
  %v55 = vrot.slane %v50, %v54
  %v73 = vunpack.c.l.b16 %v15
  %v74 = vunpack.c.h.b16 %v15
  %v75 = vunpack.c.l.b16 %v16
  %v76 = vunpack.c.h.b16 %v16
  %v77 = vunpack.c.l.b16 %v17
  %v78 = vunpack.c.h.b16 %v17
  %v79 = vunpack.c.l.b16 %v18
  %v80 = vunpack.c.h.b16 %v18
  %v81 = vunpack.c.l.b16 %v19
  %v82 = vunpack.c.h.b16 %v19
  %v83 = vunpack.c.l.b16 %v20
  %v84 = vunpack.c.h.b16 %v20
  %v85 = vunpack.c.l.b16 %v21
  %v86 = vunpack.c.h.b16 %v21
  %v87 = vunpack.c.l.b16 %v22
  %v88 = vunpack.c.h.b16 %v22
  %v89 = vunpack.c.l.b16 %v23
  %v90 = vunpack.c.h.b16 %v23
  %v91 = vunpack.c.l.b16 %v24
  %v92 = vunpack.c.h.b16 %v24
  %v93 = vunpack.c.l.b16 %v25
  %v94 = vunpack.c.h.b16 %v25
  %v95 = vunpack.c.l.b16 %v26
  %v96 = vunpack.c.h.b16 %v26
  %v97 = vunpack.c.l.b16 %v27
  %v98 = vunpack.c.h.b16 %v27
  %v99 = vunpack.c.l.b16 %v28
  %v100 = vunpack.c.h.b16 %v28
  %v101 = vunpack.c.l.b16 %v29
  %v102 = vunpack.c.h.b16 %v29
  %v103 = vunpack.c.l.b16 %v30
  %v104 = vunpack.c.h.b16 %v30
  %v105 = vpack.c.b16 %v75, %v73
  %v106 = vpack.c.b16 %v76, %v74
  %v107 = vpack.c.b16 %v79, %v77
  %v108 = vpack.c.b16 %v80, %v78
  %v109 = vpack.c.b16 %v83, %v81
  %v110 = vpack.c.b16 %v84, %v82
  %v111 = vpack.c.b16 %v87, %v85
  %v112 = vpack.c.b16 %v88, %v86
  %v113 = vpack.c.b16 %v91, %v89
  %v114 = vpack.c.b16 %v92, %v90
  %v115 = vpack.c.b16 %v95, %v93
  %v116 = vpack.c.b16 %v96, %v94
  %v117 = vpack.c.b16 %v99, %v97
  %v118 = vpack.c.b16 %v100, %v98
  %v119 = vpack.c.b16 %v103, %v101
  %v120 = vpack.c.b16 %v104, %v102
  %v148 = vunpack.c.l.b16 %v31
  %v149 = vunpack.c.l.b16 %v32
  %v150 = vunpack.c.l.b16 %v33
  %v151 = vunpack.c.l.b16 %v34
  %v152 = vunpack.c.l.b16 %v35
  %v153 = vunpack.c.l.b16 %v36
  %v154 = vunpack.c.l.b16 %v37
  %v155 = vunpack.c.l.b16 %v38
  %v156 = vunpack.c.l.b16 %v39
  %v157 = vunpack.c.l.b16 %v40
  %v158 = vunpack.c.l.b16 %v41
  %v159 = vunpack.c.l.b16 %v42
  %v160 = vunpack.c.l.b16 %v43
  %v161 = vunpack.c.l.b16 %v44
  %v162 = vunpack.c.l.b16 %v45
  %v163 = vunpack.c.l.b16 %v46
  %v164 = vunpack.c.l.b16 %v47
  %v165 = vunpack.c.l.b16 %v48
  %v166 = vunpack.c.l.b16 %v49
  %v167 = vpack.c.b16 %v149, %v148
  %v168 = vpack.c.b16 %v151, %v150
  %v169 = vpack.c.b16 %v153, %v152
  %v170 = vpack.c.b16 %v155, %v154
  %v171 = vpack.c.b16 %v157, %v156
  %v172 = vpack.c.b16 %v159, %v158
  %v173 = vpack.c.b16 %v161, %v160
  %v174 = vpack.c.b16 %v163, %v162
  %v175 = vpack.c.b16 %v165, %v164
  %v176 = vpack.c.b16 %v166, %v166
  %vm186 = vcmask 154624
  %v188 = vsel %vm186, %v106, 0
  %v191 = vsel %vm186, %v108, 0
  %v194 = vsel %vm186, %v110, 0
  %v197 = vsel %vm186, %v112, 0
  %v200 = vsel %vm186, %v114, 0
  %v203 = vsel %vm186, %v116, 0
  %v206 = vsel %vm186, %v118, 0
  %v209 = vsel %vm186, %v120, 0
  %vm211 = vcmask 1040384
  %vm212 = vcmask 1041408
  %v213 = vsel %vm211, 4294967295, 65535
  %v214 = vsel %vm212, %v213, 0
  %v216 = vand.u32 %v176, %v214
  %218 = vmatprep.subr.bf16.mxu0 0
  %219 = vmatpush1.bf16.msra.mxu0 %v174
  %220 = vmatprep.subr.bf16.mxu0 0
  %221 = vmatpush1.bf16.msra.mxu0 %v173
  %222 = vmatprep.subr.bf16.mxu0 0
  %223 = vmatpush1.bf16.msra.mxu0 %v172
  %224 = vmatprep.subr.bf16.mxu0 0
  %225 = vmatpush1.bf16.msra.mxu0 %v171
  %226 = vmatprep.subr.bf16.mxu0 0
  %227 = vmatpush1.bf16.msra.mxu0 %v170
  %228 = vmatprep.subr.bf16.mxu0 0
  %229 = vmatpush1.bf16.msra.mxu0 %v169
  %230 = vmatprep.subr.bf16.mxu0 0
  %231 = vmatpush1.bf16.msra.mxu0 %v168
  %232 = vmatprep.subr.bf16.mxu0 0
  %233 = vmatpush1.bf16.msra.mxu0 %v167
  %234 = vmatprep.subr.bf16.mxu0 0
  %235 = vmatpush2.bf16.msra.mxu0 0
  %236 = vmatprep.subr.bf16.mxu0 0
  %237 = vmatpush2.bf16.msra.mxu0 0
  %238 = vmatprep.subr.bf16.mxu0 0
  %239 = vmatpush2.bf16.msra.mxu0 0
  %240 = vmatprep.subr.bf16.mxu0 0
  %241 = vmatpush2.bf16.msra.mxu0 0
  %242 = vmatprep.subr.bf16.mxu0 0
  %243 = vmatpush2.bf16.msra.mxu0 0
  %244 = vmatprep.subr.bf16.mxu0 0
  %245 = vmatpush2.bf16.msra.mxu0 0
  %246 = vmatprep.subr.bf16.mxu0 0
  %247 = vmatpush2.bf16.msra.mxu0 %v216
  %248 = vmatprep.subr.bf16.mxu0 0
  %249 = vmatpush2.bf16.msra.mxu0 %v175
  %250 = vmatprep.mubr.bf16.mxu0 %v188
  %251 = vmatmul.mubr.bf16.gmra.mxu0 %v105
  %v252 = vpop.f32.mrf.mxu0
  %v253 = vadd.f32 %v55, %v252
  %v254 = vpop.f32.mrf.mxu0
  %v255 = vpop.f32.mrf.mxu0
  %v256 = vadd.f32 %v55, %v255
  %v257 = vpop.f32.mrf.mxu0
  %258 = vmatprep.mubr.bf16.mxu0 %v191
  %259 = vmatmul.mubr.bf16.gmra.mxu0 %v107
  %v260 = vpop.f32.mrf.mxu0
  %v261 = vadd.f32 %v55, %v260
  %v262 = vpop.f32.mrf.mxu0
  %v263 = vpop.f32.mrf.mxu0
  %v264 = vadd.f32 %v55, %v263
  %v265 = vpop.f32.mrf.mxu0
  %266 = vmatprep.mubr.bf16.mxu0 %v194
  %267 = vmatmul.mubr.bf16.gmra.mxu0 %v109
  %v268 = vpop.f32.mrf.mxu0
  %v269 = vadd.f32 %v55, %v268
  %v270 = vpop.f32.mrf.mxu0
  %v271 = vpop.f32.mrf.mxu0
  %v272 = vadd.f32 %v55, %v271
  %v273 = vpop.f32.mrf.mxu0
  %274 = vmatprep.mubr.bf16.mxu0 %v197
  %275 = vmatmul.mubr.bf16.gmra.mxu0 %v111
  %v276 = vpop.f32.mrf.mxu0
  %v277 = vadd.f32 %v55, %v276
  %v278 = vpop.f32.mrf.mxu0
  %v279 = vpop.f32.mrf.mxu0
  %v280 = vadd.f32 %v55, %v279
  %v281 = vpop.f32.mrf.mxu0
  %282 = vmatprep.mubr.bf16.mxu0 %v200
  %283 = vmatmul.mubr.bf16.gmra.mxu0 %v113
  %v284 = vpop.f32.mrf.mxu0
  %v285 = vadd.f32 %v55, %v284
  %v286 = vpop.f32.mrf.mxu0
  %v287 = vpop.f32.mrf.mxu0
  %v288 = vadd.f32 %v55, %v287
  %v289 = vpop.f32.mrf.mxu0
  %290 = vmatprep.mubr.bf16.mxu0 %v203
  %291 = vmatmul.mubr.bf16.gmra.mxu0 %v115
  %v292 = vpop.f32.mrf.mxu0
  %v293 = vadd.f32 %v55, %v292
  %v294 = vpop.f32.mrf.mxu0
  %v295 = vpop.f32.mrf.mxu0
  %v296 = vadd.f32 %v55, %v295
  %v297 = vpop.f32.mrf.mxu0
  %298 = vmatprep.mubr.bf16.mxu0 %v206
  %299 = vmatmul.mubr.bf16.gmra.mxu0 %v117
  %v300 = vpop.f32.mrf.mxu0
  %v301 = vadd.f32 %v55, %v300
  %v302 = vpop.f32.mrf.mxu0
  %v303 = vpop.f32.mrf.mxu0
  %v304 = vadd.f32 %v55, %v303
  %v305 = vpop.f32.mrf.mxu0
  %306 = vmatprep.mubr.bf16.mxu0 %v209
  %307 = vmatmul.mubr.bf16.gmra.mxu0 %v119
  %v308 = vpop.f32.mrf.mxu0
  %v309 = vadd.f32 %v55, %v308
  %v310 = vpop.f32.mrf.mxu0
  %v311 = vpop.f32.mrf.mxu0
  %v312 = vadd.f32 %v55, %v311
  %v313 = vpop.f32.mrf.mxu0
  %314 = vdwg.mxu0
  %v315 = vmax.f32 %v253, 0.0
  %v316 = vmax.f32 %v256, 0.0
  %v317 = vmax.f32 %v261, 0.0
  %v318 = vmax.f32 %v264, 0.0
  %v319 = vmax.f32 %v269, 0.0
  %v320 = vmax.f32 %v272, 0.0
  %v321 = vmax.f32 %v277, 0.0
  %v322 = vmax.f32 %v280, 0.0
  %v323 = vmax.f32 %v285, 0.0
  %v324 = vmax.f32 %v288, 0.0
  %v325 = vmax.f32 %v293, 0.0
  %v326 = vmax.f32 %v296, 0.0
  %v327 = vmax.f32 %v301, 0.0
  %v328 = vmax.f32 %v304, 0.0
  %v329 = vmax.f32 %v309, 0.0
  %v330 = vmax.f32 %v312, 0.0
  %v331 = vpack.c.bf16 %v316, %v315
  %v332 = vpack.c.bf16 %v318, %v317
  %v333 = vpack.c.bf16 %v320, %v319
  %v334 = vpack.c.bf16 %v322, %v321
  %v335 = vpack.c.bf16 %v324, %v323
  %v336 = vpack.c.bf16 %v326, %v325
  %v337 = vpack.c.bf16 %v328, %v327
  %v338 = vpack.c.bf16 %v330, %v329
  %v347 = vunpack.c.l.b16 %v331
  %v348 = vunpack.c.h.b16 %v331
  %v349 = vunpack.c.l.b16 %v332
  %v350 = vunpack.c.h.b16 %v332
  %v351 = vunpack.c.l.b16 %v333
  %v352 = vunpack.c.h.b16 %v333
  %v353 = vunpack.c.l.b16 %v334
  %v354 = vunpack.c.h.b16 %v334
  %v355 = vunpack.c.l.b16 %v335
  %v356 = vunpack.c.h.b16 %v335
  %v357 = vunpack.c.l.b16 %v336
  %v358 = vunpack.c.h.b16 %v336
  %v359 = vunpack.c.l.b16 %v337
  %v360 = vunpack.c.h.b16 %v337
  %v361 = vunpack.c.l.b16 %v338
  %v362 = vunpack.c.h.b16 %v338
  %v363 = vpack.c.b16 %v347, %v347
  %v364 = vpack.c.b16 %v348, %v348
  %v365 = vpack.c.b16 %v349, %v349
  %v366 = vpack.c.b16 %v350, %v350
  %v367 = vpack.c.b16 %v351, %v351
  %v368 = vpack.c.b16 %v352, %v352
  %v369 = vpack.c.b16 %v353, %v353
  %v370 = vpack.c.b16 %v354, %v354
  %v371 = vpack.c.b16 %v355, %v355
  %v372 = vpack.c.b16 %v356, %v356
  %v373 = vpack.c.b16 %v357, %v357
  %v374 = vpack.c.b16 %v358, %v358
  %v375 = vpack.c.b16 %v359, %v359
  %v376 = vpack.c.b16 %v360, %v360
  %v377 = vpack.c.b16 %v361, %v361
  %v378 = vpack.c.b16 %v362, %v362
  %395 = vst [vmem:[%s3] sm:$0xf] %v363
  %396 = vst [vmem:[%s3 + $0x4] sm:$0xf] %v364
  %397 = vst [vmem:[%s3 + $0x8] sm:$0xf] %v365
  %398 = vst [vmem:[%s3 + $0xc] sm:$0xf] %v366
  %399 = vst [vmem:[%s3 + $0x10] sm:$0xf] %v367
  %400 = vst [vmem:[%s3 + $0x14] sm:$0xf] %v368
  %401 = vst [vmem:[%s3 + $0x18] sm:$0xf] %v369
  %402 = vst [vmem:[%s3 + $0x1c] sm:$0xf] %v370
  %403 = vst [vmem:[%s3 + $0x20] sm:$0xf] %v371
  %404 = vst [vmem:[%s3 + $0x24] sm:$0xf] %v372
  %405 = vst [vmem:[%s3 + $0x28] sm:$0xf] %v373
  %406 = vst [vmem:[%s3 + $0x2c] sm:$0xf] %v374
  %407 = vst [vmem:[%s3 + $0x30] sm:$0xf] %v375
  %408 = vst [vmem:[%s3 + $0x34] sm:$0xf] %v376
  %409 = vst [vmem:[%s3 + $0x38] sm:$0xf] %v377
  %410 = vst [vmem:[%s3 + $0x3c] sm:$0xf] %v378
  // Predicated region
  $region14: #{cnn_classifier_forward.8} parent=0 // pred_check
    _
  $region15: #{cnn_classifier_forward.8} parent=0 // pred_check_branch
    %412 = sbr.rel (0) target = $region17
  $region16: #{cnn_classifier_forward.8} parent=0 // pred_region
    _
  $region17: #{cnn_classifier_forward.8} parent=0 // pred_fallthru
    _
  // Predicated region
  $region18: #{cnn_classifier_forward.8} parent=0 // pred_check
    _
  $region19: #{cnn_classifier_forward.8} parent=0 // pred_check_branch
    %414 = sbr.rel (0) target = $region21
  $region20: #{cnn_classifier_forward.8} parent=0 // pred_region
    _
  $region21: #{cnn_classifier_forward.8} parent=0 // pred_fallthru
    _

// kernel: cnn_classifier_forward.9
$region0: #{cnn_classifier_forward.9}
  #allocation0 [shape = 'u32[]', space=smem, size = 0x4, offset = 0x4, fixed_abs, tag = 'smem constant byte address 0x4 - core index']
  #allocation1 [shape = 'u32[144,128]{1,0:T(1,128)}', space=vmem, size = 0x12000, scoped, tag = 'internal scratch']
  %s0 = inlined_call_operand.vmem [shape: bf16[32,288], index: 0, kind: input, shape index: {}]
  %s1 = inlined_call_operand.vmem [shape: bf16[288,128], index: 1, kind: input, shape index: {}]
  %s2 = inlined_call_operand.vmem [shape: f32[1,128], index: 2, kind: input, shape index: {}]
  %s3 = inlined_call_operand.vmem [shape: bf16[32,128], index: 3, kind: output, shape index: {}]
  %s4 = sld [smem:[#allocation0]]
  $region22: #{cnn_classifier_forward.9} parent=0
    _
  %s6 = ssub.s32 1, %s4
  %s7 = scalar_select 0, %s6, %s4
  // Predicated region
  $region2: #{cnn_classifier_forward.9} parent=0 // pred_check
    _
  $region3: #{cnn_classifier_forward.9} parent=0 // pred_check_branch
    %9 = sbr.rel (0) target = $region5
  $region4: #{cnn_classifier_forward.9} parent=0 // pred_region
    _
  $region5: #{cnn_classifier_forward.9} parent=0 // pred_fallthru
    _
  // Predicated region
  $region6: #{cnn_classifier_forward.9} parent=0 // pred_check
    _
  $region7: #{cnn_classifier_forward.9} parent=0 // pred_check_branch
    %11 = sbr.rel (0) target = $region9
  $region8: #{cnn_classifier_forward.9} parent=0 // pred_region
    _
  $region9: #{cnn_classifier_forward.9} parent=0 // pred_fallthru
    _
  // Predicated region
  $region10: #{cnn_classifier_forward.9} parent=0 // pred_check
    _
  $region11: #{cnn_classifier_forward.9} parent=0 // pred_check_branch
    %13 = sbr.rel (0) target = $region13
  $region12: #{cnn_classifier_forward.9} parent=0 // pred_region
    _
  $region13: #{cnn_classifier_forward.9} parent=0 // pred_fallthru
    _
  %v15 = vld [vmem:[%s0] sm:$0xff]
  %v16 = vld [vmem:[%s0 + $0x8] sm:$0xf]
  %v17 = vld [vmem:[%s0 + $0xc] sm:$0xff]
  %v18 = vld [vmem:[%s0 + $0x14] sm:$0xf]
  %v19 = vld [vmem:[%s0 + $0x18] sm:$0xff]
  %v20 = vld [vmem:[%s0 + $0x20] sm:$0xf]
  %v21 = vld [vmem:[%s0 + $0x24] sm:$0xff]
  %v22 = vld [vmem:[%s0 + $0x2c] sm:$0xf]
  %v23 = vld [vmem:[%s1] sm:$0xf]
  %v24 = vld [vmem:[%s1 + $0x4] sm:$0xf]
  %v25 = vld [vmem:[%s1 + $0x8] sm:$0xf]
  %v26 = vld [vmem:[%s1 + $0xc] sm:$0xf]
  %v27 = vld [vmem:[%s1 + $0x10] sm:$0xf]
  %v28 = vld [vmem:[%s1 + $0x14] sm:$0xf]
  %v29 = vld [vmem:[%s1 + $0x18] sm:$0xf]
  %v30 = vld [vmem:[%s1 + $0x1c] sm:$0xf]
  %v31 = vld [vmem:[%s1 + $0x20] sm:$0xf]
  %v32 = vld [vmem:[%s1 + $0x24] sm:$0xf]
  %v33 = vld [vmem:[%s1 + $0x28] sm:$0xf]
  %v34 = vld [vmem:[%s1 + $0x2c] sm:$0xf]
  %v35 = vld [vmem:[%s1 + $0x30] sm:$0xf]
  %v36 = vld [vmem:[%s1 + $0x34] sm:$0xf]
  %v37 = vld [vmem:[%s1 + $0x38] sm:$0xf]
  %v38 = vld [vmem:[%s1 + $0x3c] sm:$0xf]
  %v39 = vld [vmem:[%s1 + $0x40] sm:$0xf]
  %v40 = vld [vmem:[%s1 + $0x44] sm:$0xf]
  %v41 = vld [vmem:[%s1 + $0x48] sm:$0xf]
  %v42 = vld [vmem:[%s1 + $0x4c] sm:$0xf]
  %v43 = vld [vmem:[%s1 + $0x50] sm:$0xf]
  %v44 = vld [vmem:[%s1 + $0x54] sm:$0xf]
  %v45 = vld [vmem:[%s1 + $0x58] sm:$0xf]
  %v46 = vld [vmem:[%s1 + $0x5c] sm:$0xf]
  %v47 = vld [vmem:[%s1 + $0x60] sm:$0xf]
  %v48 = vld [vmem:[%s1 + $0x64] sm:$0xf]
  %v49 = vld [vmem:[%s1 + $0x68] sm:$0xf]
  %v50 = vld [vmem:[%s1 + $0x6c] sm:$0xf]
  %v51 = vld [vmem:[%s1 + $0x70] sm:$0xf]
  %v52 = vld [vmem:[%s1 + $0x74] sm:$0xf]
  %v53 = vld [vmem:[%s1 + $0x78] sm:$0xf]
  %v54 = vld [vmem:[%s1 + $0x7c] sm:$0xf]
  %v55 = vld [vmem:[%s1 + $0x80] sm:$0xf]
  %v56 = vld [vmem:[%s1 + $0x84] sm:$0xf]
  %v57 = vld [vmem:[%s1 + $0x88] sm:$0xf]
  %v58 = vld [vmem:[%s1 + $0x8c] sm:$0xf]
  %v59 = vld [vmem:[%s2] sm:$0x1]
  %v61 = vlaneseq
  %v62 = vshrl.u32 %v61, 7
  %v63 = vsub.s32 0, %v62
  %v64 = vrot.slane %v59, %v63
  %v74 = vunpack.c.l.b16 %v15
  %v75 = vunpack.c.h.b16 %v15
  %v76 = vunpack.c.l.b16 %v16
  %v77 = vunpack.c.l.b16 %v17
  %v78 = vunpack.c.h.b16 %v17
  %v79 = vunpack.c.l.b16 %v18
  %v80 = vunpack.c.l.b16 %v19
  %v81 = vunpack.c.h.b16 %v19
  %v82 = vunpack.c.l.b16 %v20
  %v83 = vunpack.c.l.b16 %v21
  %v84 = vunpack.c.h.b16 %v21
  %v85 = vunpack.c.l.b16 %v22
  %v86 = vpack.c.b16 %v77, %v74
  %v87 = vpack.c.b16 %v78, %v75
  %v88 = vpack.c.b16 %v79, %v76
  %v89 = vpack.c.b16 %v83, %v80
  %v90 = vpack.c.b16 %v84, %v81
  %v91 = vpack.c.b16 %v85, %v82
  %v132 = vunpack.c.l.b16 %v23
  %v133 = vunpack.c.l.b16 %v24
  %v134 = vunpack.c.l.b16 %v25
  %v135 = vunpack.c.l.b16 %v26
  %v136 = vunpack.c.l.b16 %v27
  %v137 = vunpack.c.l.b16 %v28
  %v138 = vunpack.c.l.b16 %v29
  %v139 = vunpack.c.l.b16 %v30
  %v140 = vunpack.c.l.b16 %v31
  %v141 = vunpack.c.l.b16 %v32
  %v142 = vunpack.c.l.b16 %v33
  %v143 = vunpack.c.l.b16 %v34
  %v144 = vunpack.c.l.b16 %v35
  %v145 = vunpack.c.l.b16 %v36
  %v146 = vunpack.c.l.b16 %v37
  %v147 = vunpack.c.l.b16 %v38
  %v148 = vunpack.c.l.b16 %v39
  %v149 = vunpack.c.l.b16 %v40
  %v150 = vunpack.c.l.b16 %v41
  %v151 = vunpack.c.l.b16 %v42
  %v152 = vunpack.c.l.b16 %v43
  %v153 = vunpack.c.l.b16 %v44
  %v154 = vunpack.c.l.b16 %v45
  %v155 = vunpack.c.l.b16 %v46
  %v156 = vunpack.c.l.b16 %v47
  %v157 = vunpack.c.l.b16 %v48
  %v158 = vunpack.c.l.b16 %v49
  %v159 = vunpack.c.l.b16 %v50
  %v160 = vunpack.c.l.b16 %v51
  %v161 = vunpack.c.l.b16 %v52
  %v162 = vunpack.c.l.b16 %v53
  %v163 = vunpack.c.l.b16 %v54
  %v164 = vunpack.c.l.b16 %v55
  %v165 = vunpack.c.l.b16 %v56
  %v166 = vunpack.c.l.b16 %v57
  %v167 = vunpack.c.l.b16 %v58
  %v168 = vpack.c.b16 %v133, %v132
  %v169 = vpack.c.b16 %v135, %v134
  %v170 = vpack.c.b16 %v137, %v136
  %v171 = vpack.c.b16 %v139, %v138
  %v172 = vpack.c.b16 %v141, %v140
  %v173 = vpack.c.b16 %v143, %v142
  %v174 = vpack.c.b16 %v145, %v144
  %v175 = vpack.c.b16 %v147, %v146
  %v176 = vpack.c.b16 %v149, %v148
  %v177 = vpack.c.b16 %v151, %v150
  %v178 = vpack.c.b16 %v153, %v152
  %v179 = vpack.c.b16 %v155, %v154
  %v180 = vpack.c.b16 %v157, %v156
  %v181 = vpack.c.b16 %v159, %v158
  %v182 = vpack.c.b16 %v161, %v160
  %v183 = vpack.c.b16 %v163, %v162
  %v184 = vpack.c.b16 %v165, %v164
  %v185 = vpack.c.b16 %v167, %v166
  %vm204 = vcmask 261120
  %v206 = vsel %vm204, %v88, 0
  %v209 = vsel %vm204, %v91, 0
  %211 = vmatprep.subr.bf16.mxu0 0
  %212 = vmatpush1.bf16.msra.mxu0 %v175
  %213 = vmatprep.subr.bf16.mxu0 0
  %214 = vmatpush1.bf16.msra.mxu0 %v174
  %215 = vmatprep.subr.bf16.mxu0 0
  %216 = vmatpush1.bf16.msra.mxu0 %v173
  %217 = vmatprep.subr.bf16.mxu0 0
  %218 = vmatpush1.bf16.msra.mxu0 %v172
  %219 = vmatprep.subr.bf16.mxu0 0
  %220 = vmatpush1.bf16.msra.mxu0 %v171
  %221 = vmatprep.subr.bf16.mxu0 0
  %222 = vmatpush1.bf16.msra.mxu0 %v170
  %223 = vmatprep.subr.bf16.mxu0 0
  %224 = vmatpush1.bf16.msra.mxu0 %v169
  %225 = vmatprep.subr.bf16.mxu0 0
  %226 = vmatpush1.bf16.msra.mxu0 %v168
  %227 = vmatprep.subr.bf16.mxu0 0
  %228 = vmatpush2.bf16.msra.mxu0 %v183
  %229 = vmatprep.subr.bf16.mxu0 0
  %230 = vmatpush2.bf16.msra.mxu0 %v182
  %231 = vmatprep.subr.bf16.mxu0 0
  %232 = vmatpush2.bf16.msra.mxu0 %v181
  %233 = vmatprep.subr.bf16.mxu0 0
  %234 = vmatpush2.bf16.msra.mxu0 %v180
  %235 = vmatprep.subr.bf16.mxu0 0
  %236 = vmatpush2.bf16.msra.mxu0 %v179
  %237 = vmatprep.subr.bf16.mxu0 0
  %238 = vmatpush2.bf16.msra.mxu0 %v178
  %239 = vmatprep.subr.bf16.mxu0 0
  %240 = vmatpush2.bf16.msra.mxu0 %v177
  %241 = vmatprep.subr.bf16.mxu0 0
  %242 = vmatpush2.bf16.msra.mxu0 %v176
  %243 = vmatprep.mubr.bf16.mxu0 %v87
  %244 = vmatmul.mubr.bf16.gmra.mxu0 %v86
  %v245 = vpop.f32.mrf.mxu0
  %v246 = vadd.f32 %v64, %v245
  %v247 = vpop.f32.mrf.mxu0
  %v248 = vpop.f32.mrf.mxu0
  %v249 = vadd.f32 %v64, %v248
  %v250 = vpop.f32.mrf.mxu0
  %251 = vmatprep.mubr.bf16.mxu0 %v90
  %252 = vmatmul.mubr.bf16.gmra.mxu0 %v89
  %v253 = vpop.f32.mrf.mxu0
  %v254 = vadd.f32 %v64, %v253
  %v255 = vpop.f32.mrf.mxu0
  %v256 = vpop.f32.mrf.mxu0
  %v257 = vadd.f32 %v64, %v256
  %v258 = vpop.f32.mrf.mxu0
  %259 = vdwg.mxu0
  %260 = vmatprep.subr.bf16.mxu0 0
  %261 = vmatpush1.bf16.msra.mxu0 0
  %262 = vmatprep.subr.bf16.mxu0 0
  %263 = vmatpush1.bf16.msra.mxu0 0
  %264 = vmatprep.subr.bf16.mxu0 0
  %265 = vmatpush1.bf16.msra.mxu0 0
  %266 = vmatprep.subr.bf16.mxu0 0
  %267 = vmatpush1.bf16.msra.mxu0 0
  %268 = vmatprep.subr.bf16.mxu0 0
  %269 = vmatpush1.bf16.msra.mxu0 0
  %270 = vmatprep.subr.bf16.mxu0 0
  %271 = vmatpush1.bf16.msra.mxu0 0
  %272 = vmatprep.subr.bf16.mxu0 0
  %273 = vmatpush1.bf16.msra.mxu0 %v185
  %274 = vmatprep.subr.bf16.mxu0 0
  %275 = vmatpush1.bf16.msra.mxu0 %v184
  %276 = vmatprep.subr.bf16.mxu0 0
  %277 = vmatpush2.bf16.msra.mxu0 0
  %278 = vmatprep.subr.bf16.mxu0 0
  %279 = vmatpush2.bf16.msra.mxu0 0
  %280 = vmatprep.subr.bf16.mxu0 0
  %281 = vmatpush2.bf16.msra.mxu0 0
  %282 = vmatprep.subr.bf16.mxu0 0
  %283 = vmatpush2.bf16.msra.mxu0 0
  %284 = vmatprep.subr.bf16.mxu0 0
  %285 = vmatpush2.bf16.msra.mxu0 0
  %286 = vmatprep.subr.bf16.mxu0 0
  %287 = vmatpush2.bf16.msra.mxu0 0
  %288 = vmatprep.subr.bf16.mxu0 0
  %289 = vmatpush2.bf16.msra.mxu0 0
  %290 = vmatprep.subr.bf16.mxu0 0
  %291 = vmatpush2.bf16.msra.mxu0 0
  %292 = vmatprep.mubr.bf16.mxu0 0
  %293 = vmatmul.mubr.bf16.gmra.mxu0 %v206
  %v294 = vpop.f32.mrf.mxu0
  %v295 = vadd.f32 %v246, %v294
  %v296 = vpop.f32.mrf.mxu0
  %v297 = vpop.f32.mrf.mxu0
  %v298 = vadd.f32 %v249, %v297
  %v299 = vpop.f32.mrf.mxu0
  %300 = vmatprep.mubr.bf16.mxu0 0
  %301 = vmatmul.mubr.bf16.gmra.mxu0 %v209
  %v302 = vpop.f32.mrf.mxu0
  %v303 = vadd.f32 %v254, %v302
  %v304 = vpop.f32.mrf.mxu0
  %v305 = vpop.f32.mrf.mxu0
  %v306 = vadd.f32 %v257, %v305
  %v307 = vpop.f32.mrf.mxu0
  %308 = vdwg.mxu0
  %v309 = vmax.f32 %v295, 0.0
  %v310 = vmax.f32 %v298, 0.0
  %v311 = vmax.f32 %v303, 0.0
  %v312 = vmax.f32 %v306, 0.0
  %v313 = vpack.c.bf16 %v310, %v309
  %v314 = vpack.c.bf16 %v312, %v311
  %v317 = vunpack.c.l.b16 %v313
  %v318 = vunpack.c.h.b16 %v313
  %v319 = vunpack.c.l.b16 %v314
  %v320 = vunpack.c.h.b16 %v314
  %v321 = vpack.c.b16 %v317, %v317
  %v322 = vpack.c.b16 %v318, %v318
  %v323 = vpack.c.b16 %v319, %v319
  %v324 = vpack.c.b16 %v320, %v320
  %329 = vst [vmem:[%s3] sm:$0xf] %v321
  %330 = vst [vmem:[%s3 + $0x4] sm:$0xf] %v322
  %331 = vst [vmem:[%s3 + $0x8] sm:$0xf] %v323
  %332 = vst [vmem:[%s3 + $0xc] sm:$0xf] %v324
  // Predicated region
  $region14: #{cnn_classifier_forward.9} parent=0 // pred_check
    _
  $region15: #{cnn_classifier_forward.9} parent=0 // pred_check_branch
    %334 = sbr.rel (0) target = $region17
  $region16: #{cnn_classifier_forward.9} parent=0 // pred_region
    _
  $region17: #{cnn_classifier_forward.9} parent=0 // pred_fallthru
    _
  // Predicated region
  $region18: #{cnn_classifier_forward.9} parent=0 // pred_check
    _
  $region19: #{cnn_classifier_forward.9} parent=0 // pred_check_branch
    %336 = sbr.rel (0) target = $region21
  $region20: #{cnn_classifier_forward.9} parent=0 // pred_region
    _
  $region21: #{cnn_classifier_forward.9} parent=0 // pred_fallthru
    _

// kernel: cnn_classifier_forward.11
$region0: #{cnn_classifier_forward.11}
  #allocation0 [shape = 'u32[]', space=smem, size = 0x4, offset = 0x4, fixed_abs, tag = 'smem constant byte address 0x4 - core index']
  #allocation1 [shape = 'u32[144,128]{1,0:T(1,128)}', space=vmem, size = 0x12000, scoped, tag = 'internal scratch']
  %s0 = inlined_call_operand.vmem [shape: bf16[8,288], index: 0, kind: input, shape index: {}]
  %s1 = inlined_call_operand.vmem [shape: bf16[288,128], index: 1, kind: input, shape index: {}]
  %s2 = inlined_call_operand.vmem [shape: f32[1,128], index: 2, kind: input, shape index: {}]
  %s3 = inlined_call_operand.vmem [shape: bf16[8,128], index: 3, kind: output, shape index: {}]
  %s4 = sld [smem:[#allocation0]]
  $region22: #{cnn_classifier_forward.11} parent=0
    _
  %s6 = ssub.s32 1, %s4
  %s7 = scalar_select 0, %s6, %s4
  // Predicated region
  $region2: #{cnn_classifier_forward.11} parent=0 // pred_check
    _
  $region3: #{cnn_classifier_forward.11} parent=0 // pred_check_branch
    %9 = sbr.rel (0) target = $region5
  $region4: #{cnn_classifier_forward.11} parent=0 // pred_region
    _
  $region5: #{cnn_classifier_forward.11} parent=0 // pred_fallthru
    _
  // Predicated region
  $region6: #{cnn_classifier_forward.11} parent=0 // pred_check
    _
  $region7: #{cnn_classifier_forward.11} parent=0 // pred_check_branch
    %11 = sbr.rel (0) target = $region9
  $region8: #{cnn_classifier_forward.11} parent=0 // pred_region
    _
  $region9: #{cnn_classifier_forward.11} parent=0 // pred_fallthru
    _
  // Predicated region
  $region10: #{cnn_classifier_forward.11} parent=0 // pred_check
    _
  $region11: #{cnn_classifier_forward.11} parent=0 // pred_check_branch
    %13 = sbr.rel (0) target = $region13
  $region12: #{cnn_classifier_forward.11} parent=0 // pred_region
    _
  $region13: #{cnn_classifier_forward.11} parent=0 // pred_fallthru
    _
  %v15 = vld [vmem:[%s0] sm:$0xff]
  %v16 = vld [vmem:[%s0 + $0x8] sm:$0xf]
  %v17 = vld [vmem:[%s1] sm:$0xf]
  %v18 = vld [vmem:[%s1 + $0x4] sm:$0xf]
  %v19 = vld [vmem:[%s1 + $0x8] sm:$0xf]
  %v20 = vld [vmem:[%s1 + $0xc] sm:$0xf]
  %v21 = vld [vmem:[%s1 + $0x10] sm:$0xf]
  %v22 = vld [vmem:[%s1 + $0x14] sm:$0xf]
  %v23 = vld [vmem:[%s1 + $0x18] sm:$0xf]
  %v24 = vld [vmem:[%s1 + $0x1c] sm:$0xf]
  %v25 = vld [vmem:[%s1 + $0x20] sm:$0xf]
  %v26 = vld [vmem:[%s1 + $0x24] sm:$0xf]
  %v27 = vld [vmem:[%s1 + $0x28] sm:$0xf]
  %v28 = vld [vmem:[%s1 + $0x2c] sm:$0xf]
  %v29 = vld [vmem:[%s1 + $0x30] sm:$0xf]
  %v30 = vld [vmem:[%s1 + $0x34] sm:$0xf]
  %v31 = vld [vmem:[%s1 + $0x38] sm:$0xf]
  %v32 = vld [vmem:[%s1 + $0x3c] sm:$0xf]
  %v33 = vld [vmem:[%s1 + $0x40] sm:$0xf]
  %v34 = vld [vmem:[%s1 + $0x44] sm:$0xf]
  %v35 = vld [vmem:[%s1 + $0x48] sm:$0xf]
  %v36 = vld [vmem:[%s1 + $0x4c] sm:$0xf]
  %v37 = vld [vmem:[%s1 + $0x50] sm:$0xf]
  %v38 = vld [vmem:[%s1 + $0x54] sm:$0xf]
  %v39 = vld [vmem:[%s1 + $0x58] sm:$0xf]
  %v40 = vld [vmem:[%s1 + $0x5c] sm:$0xf]
  %v41 = vld [vmem:[%s1 + $0x60] sm:$0xf]
  %v42 = vld [vmem:[%s1 + $0x64] sm:$0xf]
  %v43 = vld [vmem:[%s1 + $0x68] sm:$0xf]
  %v44 = vld [vmem:[%s1 + $0x6c] sm:$0xf]
  %v45 = vld [vmem:[%s1 + $0x70] sm:$0xf]
  %v46 = vld [vmem:[%s1 + $0x74] sm:$0xf]
  %v47 = vld [vmem:[%s1 + $0x78] sm:$0xf]
  %v48 = vld [vmem:[%s1 + $0x7c] sm:$0xf]
  %v49 = vld [vmem:[%s1 + $0x80] sm:$0xf]
  %v50 = vld [vmem:[%s1 + $0x84] sm:$0xf]
  %v51 = vld [vmem:[%s1 + $0x88] sm:$0xf]
  %v52 = vld [vmem:[%s1 + $0x8c] sm:$0xf]
  %v53 = vld [vmem:[%s2] sm:$0x1]
  %v55 = vlaneseq
  %v56 = vshrl.u32 %v55, 7
  %v57 = vsub.s32 0, %v56
  %v58 = vrot.slane %v53, %v57
  %v62 = vunpack.c.l.b16 %v15
  %v63 = vunpack.c.h.b16 %v15
  %v64 = vunpack.c.l.b16 %v16
  %v65 = vpack.c.b16 %v62, %v62
  %v66 = vpack.c.b16 %v63, %v63
  %v67 = vpack.c.b16 %v64, %v64
  %v106 = vunpack.c.l.b16 %v17
  %v107 = vunpack.c.l.b16 %v18
  %v108 = vunpack.c.l.b16 %v19
  %v109 = vunpack.c.l.b16 %v20
  %v110 = vunpack.c.l.b16 %v21
  %v111 = vunpack.c.l.b16 %v22
  %v112 = vunpack.c.l.b16 %v23
  %v113 = vunpack.c.l.b16 %v24
  %v114 = vunpack.c.l.b16 %v25
  %v115 = vunpack.c.l.b16 %v26
  %v116 = vunpack.c.l.b16 %v27
  %v117 = vunpack.c.l.b16 %v28
  %v118 = vunpack.c.l.b16 %v29
  %v119 = vunpack.c.l.b16 %v30
  %v120 = vunpack.c.l.b16 %v31
  %v121 = vunpack.c.l.b16 %v32
  %v122 = vunpack.c.l.b16 %v33
  %v123 = vunpack.c.l.b16 %v34
  %v124 = vunpack.c.l.b16 %v35
  %v125 = vunpack.c.l.b16 %v36
  %v126 = vunpack.c.l.b16 %v37
  %v127 = vunpack.c.l.b16 %v38
  %v128 = vunpack.c.l.b16 %v39
  %v129 = vunpack.c.l.b16 %v40
  %v130 = vunpack.c.l.b16 %v41
  %v131 = vunpack.c.l.b16 %v42
  %v132 = vunpack.c.l.b16 %v43
  %v133 = vunpack.c.l.b16 %v44
  %v134 = vunpack.c.l.b16 %v45
  %v135 = vunpack.c.l.b16 %v46
  %v136 = vunpack.c.l.b16 %v47
  %v137 = vunpack.c.l.b16 %v48
  %v138 = vunpack.c.l.b16 %v49
  %v139 = vunpack.c.l.b16 %v50
  %v140 = vunpack.c.l.b16 %v51
  %v141 = vunpack.c.l.b16 %v52
  %v142 = vpack.c.b16 %v107, %v106
  %v143 = vpack.c.b16 %v109, %v108
  %v144 = vpack.c.b16 %v111, %v110
  %v145 = vpack.c.b16 %v113, %v112
  %v146 = vpack.c.b16 %v115, %v114
  %v147 = vpack.c.b16 %v117, %v116
  %v148 = vpack.c.b16 %v119, %v118
  %v149 = vpack.c.b16 %v121, %v120
  %v150 = vpack.c.b16 %v123, %v122
  %v151 = vpack.c.b16 %v125, %v124
  %v152 = vpack.c.b16 %v127, %v126
  %v153 = vpack.c.b16 %v129, %v128
  %v154 = vpack.c.b16 %v131, %v130
  %v155 = vpack.c.b16 %v133, %v132
  %v156 = vpack.c.b16 %v135, %v134
  %v157 = vpack.c.b16 %v137, %v136
  %v158 = vpack.c.b16 %v139, %v138
  %v159 = vpack.c.b16 %v141, %v140
  %vm178 = vcmask 261120
  %v180 = vsel %vm178, %v67, 0
  %182 = vmatprep.subr.bf16.mxu0 0
  %183 = vmatpush1.bf16.msra.mxu0 %v149
  %184 = vmatprep.subr.bf16.mxu0 0
  %185 = vmatpush1.bf16.msra.mxu0 %v148
  %186 = vmatprep.subr.bf16.mxu0 0
  %187 = vmatpush1.bf16.msra.mxu0 %v147
  %188 = vmatprep.subr.bf16.mxu0 0
  %189 = vmatpush1.bf16.msra.mxu0 %v146
  %190 = vmatprep.subr.bf16.mxu0 0
  %191 = vmatpush1.bf16.msra.mxu0 %v145
  %192 = vmatprep.subr.bf16.mxu0 0
  %193 = vmatpush1.bf16.msra.mxu0 %v144
  %194 = vmatprep.subr.bf16.mxu0 0
  %195 = vmatpush1.bf16.msra.mxu0 %v143
  %196 = vmatprep.subr.bf16.mxu0 0
  %197 = vmatpush1.bf16.msra.mxu0 %v142
  %198 = vmatprep.subr.bf16.mxu0 0
  %199 = vmatpush2.bf16.msra.mxu0 %v157
  %200 = vmatprep.subr.bf16.mxu0 0
  %201 = vmatpush2.bf16.msra.mxu0 %v156
  %202 = vmatprep.subr.bf16.mxu0 0
  %203 = vmatpush2.bf16.msra.mxu0 %v155
  %204 = vmatprep.subr.bf16.mxu0 0
  %205 = vmatpush2.bf16.msra.mxu0 %v154
  %206 = vmatprep.subr.bf16.mxu0 0
  %207 = vmatpush2.bf16.msra.mxu0 %v153
  %208 = vmatprep.subr.bf16.mxu0 0
  %209 = vmatpush2.bf16.msra.mxu0 %v152
  %210 = vmatprep.subr.bf16.mxu0 0
  %211 = vmatpush2.bf16.msra.mxu0 %v151
  %212 = vmatprep.subr.bf16.mxu0 0
  %213 = vmatpush2.bf16.msra.mxu0 %v150
  %214 = vmatprep.mubr.bf16.mxu0 %v66
  %215 = vmatmul.mubr.bf16.gmra.mxu0 %v65
  %v216 = vpop.f32.mrf.mxu0
  %v217 = vadd.f32 %v58, %v216
  %v218 = vpop.f32.mrf.mxu0
  %v219 = vpop.f32.mrf.mxu0
  %v220 = vpop.f32.mrf.mxu0
  %221 = vdwg.mxu0
  %222 = vmatprep.subr.bf16.mxu0 0
  %223 = vmatpush1.bf16.msra.mxu0 0
  %224 = vmatprep.subr.bf16.mxu0 0
  %225 = vmatpush1.bf16.msra.mxu0 0
  %226 = vmatprep.subr.bf16.mxu0 0
  %227 = vmatpush1.bf16.msra.mxu0 0
  %228 = vmatprep.subr.bf16.mxu0 0
  %229 = vmatpush1.bf16.msra.mxu0 0
  %230 = vmatprep.subr.bf16.mxu0 0
  %231 = vmatpush1.bf16.msra.mxu0 0
  %232 = vmatprep.subr.bf16.mxu0 0
  %233 = vmatpush1.bf16.msra.mxu0 0
  %234 = vmatprep.subr.bf16.mxu0 0
  %235 = vmatpush1.bf16.msra.mxu0 %v159
  %236 = vmatprep.subr.bf16.mxu0 0
  %237 = vmatpush1.bf16.msra.mxu0 %v158
  %238 = vmatprep.subr.bf16.mxu0 0
  %239 = vmatpush2.bf16.msra.mxu0 0
  %240 = vmatprep.subr.bf16.mxu0 0
  %241 = vmatpush2.bf16.msra.mxu0 0
  %242 = vmatprep.subr.bf16.mxu0 0
  %243 = vmatpush2.bf16.msra.mxu0 0
  %244 = vmatprep.subr.bf16.mxu0 0
  %245 = vmatpush2.bf16.msra.mxu0 0
  %246 = vmatprep.subr.bf16.mxu0 0
  %247 = vmatpush2.bf16.msra.mxu0 0
  %248 = vmatprep.subr.bf16.mxu0 0
  %249 = vmatpush2.bf16.msra.mxu0 0
  %250 = vmatprep.subr.bf16.mxu0 0
  %251 = vmatpush2.bf16.msra.mxu0 0
  %252 = vmatprep.subr.bf16.mxu0 0
  %253 = vmatpush2.bf16.msra.mxu0 0
  %254 = vmatprep.mubr.bf16.mxu0 0
  %255 = vmatmul.mubr.bf16.gmra.mxu0 %v180
  %v256 = vpop.f32.mrf.mxu0
  %v257 = vadd.f32 %v217, %v256
  %v258 = vpop.f32.mrf.mxu0
  %v259 = vpop.f32.mrf.mxu0
  %v260 = vpop.f32.mrf.mxu0
  %261 = vdwg.mxu0
  %v262 = vmax.f32 %v257, 0.0
  %v263 = vpack.c.bf16 %v262, %v262
  %264 = vst [vmem:[%s3] sm:$0xf] %v263
  // Predicated region
  $region14: #{cnn_classifier_forward.11} parent=0 // pred_check
    _
  $region15: #{cnn_classifier_forward.11} parent=0 // pred_check_branch
    %266 = sbr.rel (0) target = $region17
  $region16: #{cnn_classifier_forward.11} parent=0 // pred_region
    _
  $region17: #{cnn_classifier_forward.11} parent=0 // pred_fallthru
    _
  // Predicated region
  $region18: #{cnn_classifier_forward.11} parent=0 // pred_check
    _
  $region19: #{cnn_classifier_forward.11} parent=0 // pred_check_branch
    %268 = sbr.rel (0) target = $region21
  $region20: #{cnn_classifier_forward.11} parent=0 // pred_region
    _
  $region21: #{cnn_classifier_forward.11} parent=0 // pred_fallthru
    _

// kernel: cnn_classifier_forward.12
$region0: #{cnn_classifier_forward.12}
  #allocation0 [shape = 'u32[]', space=smem, size = 0x4, offset = 0x4, fixed_abs, tag = 'smem constant byte address 0x4 - core index']
  #allocation1 [shape = 'u32[144,128]{1,0:T(1,128)}', space=vmem, size = 0x12000, scoped, tag = 'internal scratch']
  %s0 = inlined_call_operand.vmem [shape: bf16[8,576], index: 0, kind: input, shape index: {}]
  %s1 = inlined_call_operand.vmem [shape: bf16[576,128], index: 1, kind: input, shape index: {}]
  %s2 = inlined_call_operand.vmem [shape: f32[1,128], index: 2, kind: input, shape index: {}]
  %s3 = inlined_call_operand.vmem [shape: bf16[8,128], index: 3, kind: output, shape index: {}]
  %s4 = sld [smem:[#allocation0]]
  $region22: #{cnn_classifier_forward.12} parent=0
    _
  %s6 = ssub.s32 1, %s4
  %s7 = scalar_select 0, %s6, %s4
  // Predicated region
  $region2: #{cnn_classifier_forward.12} parent=0 // pred_check
    _
  $region3: #{cnn_classifier_forward.12} parent=0 // pred_check_branch
    %9 = sbr.rel (0) target = $region5
  $region4: #{cnn_classifier_forward.12} parent=0 // pred_region
    _
  $region5: #{cnn_classifier_forward.12} parent=0 // pred_fallthru
    _
  // Predicated region
  $region6: #{cnn_classifier_forward.12} parent=0 // pred_check
    _
  $region7: #{cnn_classifier_forward.12} parent=0 // pred_check_branch
    %11 = sbr.rel (0) target = $region9
  $region8: #{cnn_classifier_forward.12} parent=0 // pred_region
    _
  $region9: #{cnn_classifier_forward.12} parent=0 // pred_fallthru
    _
  // Predicated region
  $region10: #{cnn_classifier_forward.12} parent=0 // pred_check
    _
  $region11: #{cnn_classifier_forward.12} parent=0 // pred_check_branch
    %13 = sbr.rel (0) target = $region13
  $region12: #{cnn_classifier_forward.12} parent=0 // pred_region
    _
  $region13: #{cnn_classifier_forward.12} parent=0 // pred_fallthru
    _
  %v15 = vld [vmem:[%s0] sm:$0xff]
  %v16 = vld [vmem:[%s0 + $0x8] sm:$0xff]
  %v17 = vld [vmem:[%s0 + $0x10] sm:$0xf]
  %v18 = vld [vmem:[%s1] sm:$0xf]
  %v19 = vld [vmem:[%s1 + $0x4] sm:$0xf]
  %v20 = vld [vmem:[%s1 + $0x8] sm:$0xf]
  %v21 = vld [vmem:[%s1 + $0xc] sm:$0xf]
  %v22 = vld [vmem:[%s1 + $0x10] sm:$0xf]
  %v23 = vld [vmem:[%s1 + $0x14] sm:$0xf]
  %v24 = vld [vmem:[%s1 + $0x18] sm:$0xf]
  %v25 = vld [vmem:[%s1 + $0x1c] sm:$0xf]
  %v26 = vld [vmem:[%s1 + $0x20] sm:$0xf]
  %v27 = vld [vmem:[%s1 + $0x24] sm:$0xf]
  %v28 = vld [vmem:[%s1 + $0x28] sm:$0xf]
  %v29 = vld [vmem:[%s1 + $0x2c] sm:$0xf]
  %v30 = vld [vmem:[%s1 + $0x30] sm:$0xf]
  %v31 = vld [vmem:[%s1 + $0x34] sm:$0xf]
  %v32 = vld [vmem:[%s1 + $0x38] sm:$0xf]
  %v33 = vld [vmem:[%s1 + $0x3c] sm:$0xf]
  %v34 = vld [vmem:[%s1 + $0x40] sm:$0xf]
  %v35 = vld [vmem:[%s1 + $0x44] sm:$0xf]
  %v36 = vld [vmem:[%s1 + $0x48] sm:$0xf]
  %v37 = vld [vmem:[%s1 + $0x4c] sm:$0xf]
  %v38 = vld [vmem:[%s1 + $0x50] sm:$0xf]
  %v39 = vld [vmem:[%s1 + $0x54] sm:$0xf]
  %v40 = vld [vmem:[%s1 + $0x58] sm:$0xf]
  %v41 = vld [vmem:[%s1 + $0x5c] sm:$0xf]
  %v42 = vld [vmem:[%s1 + $0x60] sm:$0xf]
  %v43 = vld [vmem:[%s1 + $0x64] sm:$0xf]
  %v44 = vld [vmem:[%s1 + $0x68] sm:$0xf]
  %v45 = vld [vmem:[%s1 + $0x6c] sm:$0xf]
  %v46 = vld [vmem:[%s1 + $0x70] sm:$0xf]
  %v47 = vld [vmem:[%s1 + $0x74] sm:$0xf]
  %v48 = vld [vmem:[%s1 + $0x78] sm:$0xf]
  %v49 = vld [vmem:[%s1 + $0x7c] sm:$0xf]
  %v50 = vld [vmem:[%s1 + $0x80] sm:$0xf]
  %v51 = vld [vmem:[%s1 + $0x84] sm:$0xf]
  %v52 = vld [vmem:[%s1 + $0x88] sm:$0xf]
  %v53 = vld [vmem:[%s1 + $0x8c] sm:$0xf]
  %v54 = vld [vmem:[%s1 + $0x90] sm:$0xf]
  %v55 = vld [vmem:[%s1 + $0x94] sm:$0xf]
  %v56 = vld [vmem:[%s1 + $0x98] sm:$0xf]
  %v57 = vld [vmem:[%s1 + $0x9c] sm:$0xf]
  %v58 = vld [vmem:[%s1 + $0xa0] sm:$0xf]
  %v59 = vld [vmem:[%s1 + $0xa4] sm:$0xf]
  %v60 = vld [vmem:[%s1 + $0xa8] sm:$0xf]
  %v61 = vld [vmem:[%s1 + $0xac] sm:$0xf]
  %v62 = vld [vmem:[%s1 + $0xb0] sm:$0xf]
  %v63 = vld [vmem:[%s1 + $0xb4] sm:$0xf]
  %v64 = vld [vmem:[%s1 + $0xb8] sm:$0xf]
  %v65 = vld [vmem:[%s1 + $0xbc] sm:$0xf]
  %v66 = vld [vmem:[%s1 + $0xc0] sm:$0xf]
  %v67 = vld [vmem:[%s1 + $0xc4] sm:$0xf]
  %v68 = vld [vmem:[%s1 + $0xc8] sm:$0xf]
  %v69 = vld [vmem:[%s1 + $0xcc] sm:$0xf]
  %v70 = vld [vmem:[%s1 + $0xd0] sm:$0xf]
  %v71 = vld [vmem:[%s1 + $0xd4] sm:$0xf]
  %v72 = vld [vmem:[%s1 + $0xd8] sm:$0xf]
  %v73 = vld [vmem:[%s1 + $0xdc] sm:$0xf]
  %v74 = vld [vmem:[%s1 + $0xe0] sm:$0xf]
  %v75 = vld [vmem:[%s1 + $0xe4] sm:$0xf]
  %v76 = vld [vmem:[%s1 + $0xe8] sm:$0xf]
  %v77 = vld [vmem:[%s1 + $0xec] sm:$0xf]
  %v78 = vld [vmem:[%s1 + $0xf0] sm:$0xf]
  %v79 = vld [vmem:[%s1 + $0xf4] sm:$0xf]
  %v80 = vld [vmem:[%s1 + $0xf8] sm:$0xf]
  %v81 = vld [vmem:[%s1 + $0xfc] sm:$0xf]
  %v82 = vld [vmem:[%s1 + $0x100] sm:$0xf]
  %v83 = vld [vmem:[%s1 + $0x104] sm:$0xf]
  %v84 = vld [vmem:[%s1 + $0x108] sm:$0xf]
  %v85 = vld [vmem:[%s1 + $0x10c] sm:$0xf]
  %v86 = vld [vmem:[%s1 + $0x110] sm:$0xf]
  %v87 = vld [vmem:[%s1 + $0x114] sm:$0xf]
  %v88 = vld [vmem:[%s1 + $0x118] sm:$0xf]
  %v89 = vld [vmem:[%s1 + $0x11c] sm:$0xf]
  %v90 = vld [vmem:[%s2] sm:$0x1]
  %v92 = vlaneseq
  %v93 = vshrl.u32 %v92, 7
  %v94 = vsub.s32 0, %v93
  %v95 = vrot.slane %v90, %v94
  %v100 = vunpack.c.l.b16 %v15
  %v101 = vunpack.c.h.b16 %v15
  %v102 = vunpack.c.l.b16 %v16
  %v103 = vunpack.c.h.b16 %v16
  %v104 = vunpack.c.l.b16 %v17
  %v105 = vpack.c.b16 %v100, %v100
  %v106 = vpack.c.b16 %v101, %v101
  %v107 = vpack.c.b16 %v102, %v102
  %v108 = vpack.c.b16 %v103, %v103
  %v109 = vpack.c.b16 %v104, %v104
  %v186 = vunpack.c.l.b16 %v18
  %v187 = vunpack.c.l.b16 %v19
  %v188 = vunpack.c.l.b16 %v20
  %v189 = vunpack.c.l.b16 %v21
  %v190 = vunpack.c.l.b16 %v22
  %v191 = vunpack.c.l.b16 %v23
  %v192 = vunpack.c.l.b16 %v24
  %v193 = vunpack.c.l.b16 %v25
  %v194 = vunpack.c.l.b16 %v26
  %v195 = vunpack.c.l.b16 %v27
  %v196 = vunpack.c.l.b16 %v28
  %v197 = vunpack.c.l.b16 %v29
  %v198 = vunpack.c.l.b16 %v30
  %v199 = vunpack.c.l.b16 %v31
  %v200 = vunpack.c.l.b16 %v32
  %v201 = vunpack.c.l.b16 %v33
  %v202 = vunpack.c.l.b16 %v34
  %v203 = vunpack.c.l.b16 %v35
  %v204 = vunpack.c.l.b16 %v36
  %v205 = vunpack.c.l.b16 %v37
  %v206 = vunpack.c.l.b16 %v38
  %v207 = vunpack.c.l.b16 %v39
  %v208 = vunpack.c.l.b16 %v40
  %v209 = vunpack.c.l.b16 %v41
  %v210 = vunpack.c.l.b16 %v42
  %v211 = vunpack.c.l.b16 %v43
  %v212 = vunpack.c.l.b16 %v44
  %v213 = vunpack.c.l.b16 %v45
  %v214 = vunpack.c.l.b16 %v46
  %v215 = vunpack.c.l.b16 %v47
  %v216 = vunpack.c.l.b16 %v48
  %v217 = vunpack.c.l.b16 %v49
  %v218 = vunpack.c.l.b16 %v50
  %v219 = vunpack.c.l.b16 %v51
  %v220 = vunpack.c.l.b16 %v52
  %v221 = vunpack.c.l.b16 %v53
  %v222 = vunpack.c.l.b16 %v54
  %v223 = vunpack.c.l.b16 %v55
  %v224 = vunpack.c.l.b16 %v56
  %v225 = vunpack.c.l.b16 %v57
  %v226 = vunpack.c.l.b16 %v58
  %v227 = vunpack.c.l.b16 %v59
  %v228 = vunpack.c.l.b16 %v60
  %v229 = vunpack.c.l.b16 %v61
  %v230 = vunpack.c.l.b16 %v62
  %v231 = vunpack.c.l.b16 %v63
  %v232 = vunpack.c.l.b16 %v64
  %v233 = vunpack.c.l.b16 %v65
  %v234 = vunpack.c.l.b16 %v66
  %v235 = vunpack.c.l.b16 %v67
  %v236 = vunpack.c.l.b16 %v68
  %v237 = vunpack.c.l.b16 %v69
  %v238 = vunpack.c.l.b16 %v70
  %v239 = vunpack.c.l.b16 %v71
  %v240 = vunpack.c.l.b16 %v72
  %v241 = vunpack.c.l.b16 %v73
  %v242 = vunpack.c.l.b16 %v74
  %v243 = vunpack.c.l.b16 %v75
  %v244 = vunpack.c.l.b16 %v76
  %v245 = vunpack.c.l.b16 %v77
  %v246 = vunpack.c.l.b16 %v78
  %v247 = vunpack.c.l.b16 %v79
  %v248 = vunpack.c.l.b16 %v80
  %v249 = vunpack.c.l.b16 %v81
  %v250 = vunpack.c.l.b16 %v82
  %v251 = vunpack.c.l.b16 %v83
  %v252 = vunpack.c.l.b16 %v84
  %v253 = vunpack.c.l.b16 %v85
  %v254 = vunpack.c.l.b16 %v86
  %v255 = vunpack.c.l.b16 %v87
  %v256 = vunpack.c.l.b16 %v88
  %v257 = vunpack.c.l.b16 %v89
  %v258 = vpack.c.b16 %v187, %v186
  %v259 = vpack.c.b16 %v189, %v188
  %v260 = vpack.c.b16 %v191, %v190
  %v261 = vpack.c.b16 %v193, %v192
  %v262 = vpack.c.b16 %v195, %v194
  %v263 = vpack.c.b16 %v197, %v196
  %v264 = vpack.c.b16 %v199, %v198
  %v265 = vpack.c.b16 %v201, %v200
  %v266 = vpack.c.b16 %v203, %v202
  %v267 = vpack.c.b16 %v205, %v204
  %v268 = vpack.c.b16 %v207, %v206
  %v269 = vpack.c.b16 %v209, %v208
  %v270 = vpack.c.b16 %v211, %v210
  %v271 = vpack.c.b16 %v213, %v212
  %v272 = vpack.c.b16 %v215, %v214
  %v273 = vpack.c.b16 %v217, %v216
  %v274 = vpack.c.b16 %v219, %v218
  %v275 = vpack.c.b16 %v221, %v220
  %v276 = vpack.c.b16 %v223, %v222
  %v277 = vpack.c.b16 %v225, %v224
  %v278 = vpack.c.b16 %v227, %v226
  %v279 = vpack.c.b16 %v229, %v228
  %v280 = vpack.c.b16 %v231, %v230
  %v281 = vpack.c.b16 %v233, %v232
  %v282 = vpack.c.b16 %v235, %v234
  %v283 = vpack.c.b16 %v237, %v236
  %v284 = vpack.c.b16 %v239, %v238
  %v285 = vpack.c.b16 %v241, %v240
  %v286 = vpack.c.b16 %v243, %v242
  %v287 = vpack.c.b16 %v245, %v244
  %v288 = vpack.c.b16 %v247, %v246
  %v289 = vpack.c.b16 %v249, %v248
  %v290 = vpack.c.b16 %v251, %v250
  %v291 = vpack.c.b16 %v253, %v252
  %v292 = vpack.c.b16 %v255, %v254
  %v293 = vpack.c.b16 %v257, %v256
  %vm330 = vcmask 523264
  %v332 = vsel %vm330, %v109, 0
  %334 = vmatprep.subr.bf16.mxu0 0
  %335 = vmatpush1.bf16.msra.mxu0 %v265
  %336 = vmatprep.subr.bf16.mxu0 0
  %337 = vmatpush1.bf16.msra.mxu0 %v264
  %338 = vmatprep.subr.bf16.mxu0 0
  %339 = vmatpush1.bf16.msra.mxu0 %v263
  %340 = vmatprep.subr.bf16.mxu0 0
  %341 = vmatpush1.bf16.msra.mxu0 %v262
  %342 = vmatprep.subr.bf16.mxu0 0
  %343 = vmatpush1.bf16.msra.mxu0 %v261
  %344 = vmatprep.subr.bf16.mxu0 0
  %345 = vmatpush1.bf16.msra.mxu0 %v260
  %346 = vmatprep.subr.bf16.mxu0 0
  %347 = vmatpush1.bf16.msra.mxu0 %v259
  %348 = vmatprep.subr.bf16.mxu0 0
  %349 = vmatpush1.bf16.msra.mxu0 %v258
  %350 = vmatprep.subr.bf16.mxu0 0
  %351 = vmatpush2.bf16.msra.mxu0 %v273
  %352 = vmatprep.subr.bf16.mxu0 0
  %353 = vmatpush2.bf16.msra.mxu0 %v272
  %354 = vmatprep.subr.bf16.mxu0 0
  %355 = vmatpush2.bf16.msra.mxu0 %v271
  %356 = vmatprep.subr.bf16.mxu0 0
  %357 = vmatpush2.bf16.msra.mxu0 %v270
  %358 = vmatprep.subr.bf16.mxu0 0
  %359 = vmatpush2.bf16.msra.mxu0 %v269
  %360 = vmatprep.subr.bf16.mxu0 0
  %361 = vmatpush2.bf16.msra.mxu0 %v268
  %362 = vmatprep.subr.bf16.mxu0 0
  %363 = vmatpush2.bf16.msra.mxu0 %v267
  %364 = vmatprep.subr.bf16.mxu0 0
  %365 = vmatpush2.bf16.msra.mxu0 %v266
  %366 = vmatprep.mubr.bf16.mxu0 %v106
  %367 = vmatmul.mubr.bf16.gmra.mxu0 %v105
  %v368 = vpop.f32.mrf.mxu0
  %v369 = vadd.f32 %v95, %v368
  %v370 = vpop.f32.mrf.mxu0
  %v371 = vpop.f32.mrf.mxu0
  %v372 = vpop.f32.mrf.mxu0
  %373 = vdwg.mxu0
  %374 = vmatprep.subr.bf16.mxu0 0
  %375 = vmatpush1.bf16.msra.mxu0 %v281
  %376 = vmatprep.subr.bf16.mxu0 0
  %377 = vmatpush1.bf16.msra.mxu0 %v280
  %378 = vmatprep.subr.bf16.mxu0 0
  %379 = vmatpush1.bf16.msra.mxu0 %v279
  %380 = vmatprep.subr.bf16.mxu0 0
  %381 = vmatpush1.bf16.msra.mxu0 %v278
  %382 = vmatprep.subr.bf16.mxu0 0
  %383 = vmatpush1.bf16.msra.mxu0 %v277
  %384 = vmatprep.subr.bf16.mxu0 0
  %385 = vmatpush1.bf16.msra.mxu0 %v276
  %386 = vmatprep.subr.bf16.mxu0 0
  %387 = vmatpush1.bf16.msra.mxu0 %v275
  %388 = vmatprep.subr.bf16.mxu0 0
  %389 = vmatpush1.bf16.msra.mxu0 %v274
  %390 = vmatprep.subr.bf16.mxu0 0
  %391 = vmatpush2.bf16.msra.mxu0 %v289
  %392 = vmatprep.subr.bf16.mxu0 0
  %393 = vmatpush2.bf16.msra.mxu0 %v288
  %394 = vmatprep.subr.bf16.mxu0 0
  %395 = vmatpush2.bf16.msra.mxu0 %v287
  %396 = vmatprep.subr.bf16.mxu0 0
  %397 = vmatpush2.bf16.msra.mxu0 %v286
  %398 = vmatprep.subr.bf16.mxu0 0
  %399 = vmatpush2.bf16.msra.mxu0 %v285
  %400 = vmatprep.subr.bf16.mxu0 0
  %401 = vmatpush2.bf16.msra.mxu0 %v284
  %402 = vmatprep.subr.bf16.mxu0 0
  %403 = vmatpush2.bf16.msra.mxu0 %v283
  %404 = vmatprep.subr.bf16.mxu0 0
  %405 = vmatpush2.bf16.msra.mxu0 %v282
  %406 = vmatprep.mubr.bf16.mxu0 %v108
  %407 = vmatmul.mubr.bf16.gmra.mxu0 %v107
  %v408 = vpop.f32.mrf.mxu0
  %v409 = vadd.f32 %v369, %v408
  %v410 = vpop.f32.mrf.mxu0
  %v411 = vpop.f32.mrf.mxu0
  %v412 = vpop.f32.mrf.mxu0
  %413 = vdwg.mxu0
  %414 = vmatprep.subr.bf16.mxu0 0
  %415 = vmatpush1.bf16.msra.mxu0 0
  %416 = vmatprep.subr.bf16.mxu0 0
  %417 = vmatpush1.bf16.msra.mxu0 0
  %418 = vmatprep.subr.bf16.mxu0 0
  %419 = vmatpush1.bf16.msra.mxu0 0
  %420 = vmatprep.subr.bf16.mxu0 0
  %421 = vmatpush1.bf16.msra.mxu0 0
  %422 = vmatprep.subr.bf16.mxu0 0
  %423 = vmatpush1.bf16.msra.mxu0 %v293
  %424 = vmatprep.subr.bf16.mxu0 0
  %425 = vmatpush1.bf16.msra.mxu0 %v292
  %426 = vmatprep.subr.bf16.mxu0 0
  %427 = vmatpush1.bf16.msra.mxu0 %v291
  %428 = vmatprep.subr.bf16.mxu0 0
  %429 = vmatpush1.bf16.msra.mxu0 %v290
  %430 = vmatprep.subr.bf16.mxu0 0
  %431 = vmatpush2.bf16.msra.mxu0 0
  %432 = vmatprep.subr.bf16.mxu0 0
  %433 = vmatpush2.bf16.msra.mxu0 0
  %434 = vmatprep.subr.bf16.mxu0 0
  %435 = vmatpush2.bf16.msra.mxu0 0
  %436 = vmatprep.subr.bf16.mxu0 0
  %437 = vmatpush2.bf16.msra.mxu0 0
  %438 = vmatprep.subr.bf16.mxu0 0
  %439 = vmatpush2.bf16.msra.mxu0 0
  %440 = vmatprep.subr.bf16.mxu0 0
  %441 = vmatpush2.bf16.msra.mxu0 0
  %442 = vmatprep.subr.bf16.mxu0 0
  %443 = vmatpush2.bf16.msra.mxu0 0
  %444 = vmatprep.subr.bf16.mxu0 0
  %445 = vmatpush2.bf16.msra.mxu0 0
  %446 = vmatprep.mubr.bf16.mxu0 0
  %447 = vmatmul.mubr.bf16.gmra.mxu0 %v332
  %v448 = vpop.f32.mrf.mxu0
  %v449 = vadd.f32 %v409, %v448
  %v450 = vpop.f32.mrf.mxu0
  %v451 = vpop.f32.mrf.mxu0
  %v452 = vpop.f32.mrf.mxu0
  %453 = vdwg.mxu0
  %v454 = vmax.f32 %v449, 0.0
  %v455 = vpack.c.bf16 %v454, %v454
  %456 = vst [vmem:[%s3] sm:$0xf] %v455
  // Predicated region
  $region14: #{cnn_classifier_forward.12} parent=0 // pred_check
    _
  $region15: #{cnn_classifier_forward.12} parent=0 // pred_check_branch
    %458 = sbr.rel (0) target = $region17
  $region16: #{cnn_classifier_forward.12} parent=0 // pred_region
    _
  $region17: #{cnn_classifier_forward.12} parent=0 // pred_fallthru
    _
  // Predicated region
  $region18: #{cnn_classifier_forward.12} parent=0 // pred_check
    _
  $region19: #{cnn_classifier_forward.12} parent=0 // pred_check_branch
    %460 = sbr.rel (0) target = $region21
  $region20: #{cnn_classifier_forward.12} parent=0 // pred_region
    _
  $region21: #{cnn_classifier_forward.12} parent=0 // pred_fallthru
    _

// kernel: cnn_classifier_forward.15
$region0: #{cnn_classifier_forward.15}
  #allocation0 [shape = 'u32[]', space=smem, size = 0x4, offset = 0x4, fixed_abs, tag = 'smem constant byte address 0x4 - core index']
  #allocation1 [shape = 'u32[144,128]{1,0:T(1,128)}', space=vmem, size = 0x12000, scoped, tag = 'internal scratch']
  %s0 = inlined_call_operand.vmem [shape: bf16[2,1,128], index: 0, kind: input, shape index: {}]
  %s1 = inlined_call_operand.vmem [shape: f32[128,128], index: 1, kind: input, shape index: {}]
  %s2 = inlined_call_operand.vmem [shape: f32[1,128], index: 2, kind: input, shape index: {}]
  %s3 = inlined_call_operand.hbm [shape: f32[2,128], index: 3, kind: output, shape index: {}]
  %s4 = sld [smem:[#allocation0]]
  $region22: #{cnn_classifier_forward.15} parent=0
    _
  %s6 = ssub.s32 1, %s4
  %s7 = scalar_select 0, %s6, %s4
  $region1: #{cnn_classifier_forward.15} parent=0
    #allocation2 [shape = 'u8[1024]{0}', space=vmem, size = 0x400, scoped, tag = 'output window, operand 0, single buffered']
    #allocation3 [shape = 's32[1]{0}', space=sflag, size = 0x4, scoped, tag = 'scoped memory for cnn_classifier_forward.15']
    %8 = vsyncpa [#allocation3], 0
    // Predicated region
    $region2: #{cnn_classifier_forward.15} parent=1 // pred_check
      _
    $region3: #{cnn_classifier_forward.15} parent=1 // pred_check_branch
      %10 = sbr.rel (0) target = $region5
    $region4: #{cnn_classifier_forward.15} parent=1 // pred_region
      _
    $region5: #{cnn_classifier_forward.15} parent=1 // pred_fallthru
      _
    // Predicated region
    $region6: #{cnn_classifier_forward.15} parent=1 // pred_check
      _
    $region7: #{cnn_classifier_forward.15} parent=1 // pred_check_branch
      %12 = sbr.rel (0) target = $region9
    $region8: #{cnn_classifier_forward.15} parent=1 // pred_region
      _
    $region9: #{cnn_classifier_forward.15} parent=1 // pred_fallthru
      _
    // Predicated region
    $region10: #{cnn_classifier_forward.15} parent=1 // pred_check
      _
    $region11: #{cnn_classifier_forward.15} parent=1 // pred_check_branch
      %14 = sbr.rel (0) target = $region13
    $region12: #{cnn_classifier_forward.15} parent=1 // pred_region
      _
    $region13: #{cnn_classifier_forward.15} parent=1 // pred_fallthru
      _
    %v15 = vld [vmem:[%s0] sm:$0x1]
    %v16 = vld [vmem:[%s0 + $0x1] sm:$0x1]
    %v17 = vunpack.c.l.bf16 %v15
    %v18 = vunpack.c.l.bf16 %v16
    %v19 = vadd.f32 %v17, 0.0
    %v20 = vadd.f32 %v18, 0.0
    %v21 = vld [vmem:[%s1] sm:$0xff]
    %v22 = vld [vmem:[%s1 + $0x8] sm:$0xff]
    %v23 = vld [vmem:[%s1 + $0x10] sm:$0xff]
    %v24 = vld [vmem:[%s1 + $0x18] sm:$0xff]
    %v25 = vld [vmem:[%s1 + $0x20] sm:$0xff]
    %v26 = vld [vmem:[%s1 + $0x28] sm:$0xff]
    %v27 = vld [vmem:[%s1 + $0x30] sm:$0xff]
    %v28 = vld [vmem:[%s1 + $0x38] sm:$0xff]
    %v29 = vld [vmem:[%s1 + $0x40] sm:$0xff]
    %v30 = vld [vmem:[%s1 + $0x48] sm:$0xff]
    %v31 = vld [vmem:[%s1 + $0x50] sm:$0xff]
    %v32 = vld [vmem:[%s1 + $0x58] sm:$0xff]
    %v33 = vld [vmem:[%s1 + $0x60] sm:$0xff]
    %v34 = vld [vmem:[%s1 + $0x68] sm:$0xff]
    %v35 = vld [vmem:[%s1 + $0x70] sm:$0xff]
    %v36 = vld [vmem:[%s1 + $0x78] sm:$0xff]
    %v37 = vld [vmem:[%s2] sm:$0x1]
    %v39 = vlaneseq
    %v40 = vshrl.u32 %v39, 7
    %v41 = vsub.s32 0, %v40
    %v42 = vrot.slane %v37, %v41
    %v46 = vlaneseq
    %v47 = vshrl.u32 %v46, 7
    %v48 = vsub.s32 0, %v47
    %v49 = vrot.slane %v19, %v48
    %v50 = vlaneseq
    %v51 = vshrl.u32 %v50, 7
    %v52 = vsub.s32 0, %v51
    %v53 = vrot.slane %v20, %v52
    %vm54 = vcmask 1041409
    %v55 = vsel %vm54, %v53, %v49
    %57 = vmatprep.subr.mxu0 0.0
    %58 = vmatpush1.msra.mxu0 %v36
    %59 = vmatprep.subr.mxu0 0.0
    %60 = vmatpush1.msra.mxu0 %v35
    %61 = vmatprep.subr.mxu0 0.0
    %62 = vmatpush1.msra.mxu0 %v34
    %63 = vmatprep.subr.mxu0 0.0
    %64 = vmatpush1.msra.mxu0 %v33
    %65 = vmatprep.subr.mxu0 0.0
    %66 = vmatpush1.msra.mxu0 %v32
    %67 = vmatprep.subr.mxu0 0.0
    %68 = vmatpush1.msra.mxu0 %v31
    %69 = vmatprep.subr.mxu0 0.0
    %70 = vmatpush1.msra.mxu0 %v30
    %71 = vmatprep.subr.mxu0 0.0
    %72 = vmatpush1.msra.mxu0 %v29
    %73 = vmatprep.subr.mxu0 0.0
    %74 = vmatpush1.msra.mxu0 %v28
    %75 = vmatprep.subr.mxu0 0.0
    %76 = vmatpush1.msra.mxu0 %v27
    %77 = vmatprep.subr.mxu0 0.0
    %78 = vmatpush1.msra.mxu0 %v26
    %79 = vmatprep.subr.mxu0 0.0
    %80 = vmatpush1.msra.mxu0 %v25
    %81 = vmatprep.subr.mxu0 0.0
    %82 = vmatpush1.msra.mxu0 %v24
    %83 = vmatprep.subr.mxu0 0.0
    %84 = vmatpush1.msra.mxu0 %v23
    %85 = vmatprep.subr.mxu0 0.0
    %86 = vmatpush1.msra.mxu0 %v22
    %87 = vmatprep.subr.mxu0 0.0
    %88 = vmatpush1.msra.mxu0 %v21
    %89 = vmatprep.subr.mxu0 0.0
    %90 = vmatpush2.msra.mxu0 0.0
    %91 = vmatprep.subr.mxu0 0.0
    %92 = vmatpush2.msra.mxu0 0.0
    %93 = vmatprep.subr.mxu0 0.0
    %94 = vmatpush2.msra.mxu0 0.0
    %95 = vmatprep.subr.mxu0 0.0
    %96 = vmatpush2.msra.mxu0 0.0
    %97 = vmatprep.subr.mxu0 0.0
    %98 = vmatpush2.msra.mxu0 0.0
    %99 = vmatprep.subr.mxu0 0.0
    %100 = vmatpush2.msra.mxu0 0.0
    %101 = vmatprep.subr.mxu0 0.0
    %102 = vmatpush2.msra.mxu0 0.0
    %103 = vmatprep.subr.mxu0 0.0
    %104 = vmatpush2.msra.mxu0 0.0
    %105 = vmatprep.subr.mxu0 0.0
    %106 = vmatpush2.msra.mxu0 0.0
    %107 = vmatprep.subr.mxu0 0.0
    %108 = vmatpush2.msra.mxu0 0.0
    %109 = vmatprep.subr.mxu0 0.0
    %110 = vmatpush2.msra.mxu0 0.0
    %111 = vmatprep.subr.mxu0 0.0
    %112 = vmatpush2.msra.mxu0 0.0
    %113 = vmatprep.subr.mxu0 0.0
    %114 = vmatpush2.msra.mxu0 0.0
    %115 = vmatprep.subr.mxu0 0.0
    %116 = vmatpush2.msra.mxu0 0.0
    %117 = vmatprep.subr.mxu0 0.0
    %118 = vmatpush2.msra.mxu0 0.0
    %119 = vmatprep.subr.mxu0 0.0
    %120 = vmatpush2.msra.mxu0 0.0
    %121 = vmatprep.mubr.f32.mxu0 0.0
    %122 = vmatmul.mubr.f32.gmra.mxu0 %v55
    %v123 = vpop.f32.mrf.mxu0
    %v124 = vadd.f32 %v42, %v123
    %v125 = vpop.f32.mrf.mxu0
    %126 = vdwg.mxu0
    %127 = vst [vmem:[#allocation2] sm:$0x3] %v124
    // Predicated region
    $region14: #{cnn_classifier_forward.15} parent=1 // pred_check
      _
    $region15: #{cnn_classifier_forward.15} parent=1 // pred_check_branch
      %129 = sbr.rel (0) target = $region17
    $region16: #{cnn_classifier_forward.15} parent=1 // pred_region
      %s131 = ssub.s32 32, 32
      %132 = vsyncadd [#allocation3], %s131
      %s134 = sshll.u32 [#allocation2], 4
      %s135 = int_to_ptr.vmem [resolvable:$true] %s134
      %137 = dma.vmem_to_hbm [thread:$0]  %s135, 32, %s3, [#allocation3]
    $region17: #{cnn_classifier_forward.15} parent=1 // pred_fallthru
      _
    // Predicated region
    $region18: #{cnn_classifier_forward.15} parent=1 // pred_check
      _
    $region19: #{cnn_classifier_forward.15} parent=1 // pred_check_branch
      %139 = sbr.rel (0) target = $region21
    $region20: #{cnn_classifier_forward.15} parent=1 // pred_region
      %140 = dma.done [#allocation3], 32
    $region21: #{cnn_classifier_forward.15} parent=1 // pred_fallthru
      _
    %141 = vsyncpa [#allocation3], 1

// kernel: cnn_classifier_forward.14
$region0: #{cnn_classifier_forward.14}
  #allocation0 [shape = 'u32[]', space=smem, size = 0x4, offset = 0x4, fixed_abs, tag = 'smem constant byte address 0x4 - core index']
  #allocation1 [shape = 'u32[144,128]{1,0:T(1,128)}', space=vmem, size = 0x12000, scoped, tag = 'internal scratch']
  %s0 = inlined_call_operand.vmem [shape: bf16[8,1152], index: 0, kind: input, shape index: {}]
  %s1 = inlined_call_operand.vmem [shape: bf16[1152,128], index: 1, kind: input, shape index: {}]
  %s2 = inlined_call_operand.vmem [shape: f32[1,128], index: 2, kind: input, shape index: {}]
  %s3 = inlined_call_operand.vmem [shape: bf16[8,128], index: 3, kind: output, shape index: {}]
  %s4 = sld [smem:[#allocation0]]
  $region22: #{cnn_classifier_forward.14} parent=0
    _
  %s6 = ssub.s32 1, %s4
  %s7 = scalar_select 0, %s6, %s4
  // Predicated region
  $region2: #{cnn_classifier_forward.14} parent=0 // pred_check
    _
  $region3: #{cnn_classifier_forward.14} parent=0 // pred_check_branch
    %9 = sbr.rel (0) target = $region5
  $region4: #{cnn_classifier_forward.14} parent=0 // pred_region
    _
  $region5: #{cnn_classifier_forward.14} parent=0 // pred_fallthru
    _
  // Predicated region
  $region6: #{cnn_classifier_forward.14} parent=0 // pred_check
    _
  $region7: #{cnn_classifier_forward.14} parent=0 // pred_check_branch
    %11 = sbr.rel (0) target = $region9
  $region8: #{cnn_classifier_forward.14} parent=0 // pred_region
    _
  $region9: #{cnn_classifier_forward.14} parent=0 // pred_fallthru
    _
  // Predicated region
  $region10: #{cnn_classifier_forward.14} parent=0 // pred_check
    _
  $region11: #{cnn_classifier_forward.14} parent=0 // pred_check_branch
    %13 = sbr.rel (0) target = $region13
  $region12: #{cnn_classifier_forward.14} parent=0 // pred_region
    _
  $region13: #{cnn_classifier_forward.14} parent=0 // pred_fallthru
    _
  %v15 = vld [vmem:[%s0] sm:$0xff]
  %v16 = vld [vmem:[%s0 + $0x8] sm:$0xff]
  %v17 = vld [vmem:[%s0 + $0x10] sm:$0xff]
  %v18 = vld [vmem:[%s0 + $0x18] sm:$0xff]
  %v19 = vld [vmem:[%s0 + $0x20] sm:$0xf]
  %v20 = vld [vmem:[%s1] sm:$0xf]
  %v21 = vld [vmem:[%s1 + $0x4] sm:$0xf]
  %v22 = vld [vmem:[%s1 + $0x8] sm:$0xf]
  %v23 = vld [vmem:[%s1 + $0xc] sm:$0xf]
  %v24 = vld [vmem:[%s1 + $0x10] sm:$0xf]
  %v25 = vld [vmem:[%s1 + $0x14] sm:$0xf]
  %v26 = vld [vmem:[%s1 + $0x18] sm:$0xf]
  %v27 = vld [vmem:[%s1 + $0x1c] sm:$0xf]
  %v28 = vld [vmem:[%s1 + $0x20] sm:$0xf]
  %v29 = vld [vmem:[%s1 + $0x24] sm:$0xf]
  %v30 = vld [vmem:[%s1 + $0x28] sm:$0xf]
  %v31 = vld [vmem:[%s1 + $0x2c] sm:$0xf]
  %v32 = vld [vmem:[%s1 + $0x30] sm:$0xf]
  %v33 = vld [vmem:[%s1 + $0x34] sm:$0xf]
  %v34 = vld [vmem:[%s1 + $0x38] sm:$0xf]
  %v35 = vld [vmem:[%s1 + $0x3c] sm:$0xf]
  %v36 = vld [vmem:[%s1 + $0x40] sm:$0xf]
  %v37 = vld [vmem:[%s1 + $0x44] sm:$0xf]
  %v38 = vld [vmem:[%s1 + $0x48] sm:$0xf]
  %v39 = vld [vmem:[%s1 + $0x4c] sm:$0xf]
  %v40 = vld [vmem:[%s1 + $0x50] sm:$0xf]
  %v41 = vld [vmem:[%s1 + $0x54] sm:$0xf]
  %v42 = vld [vmem:[%s1 + $0x58] sm:$0xf]
  %v43 = vld [vmem:[%s1 + $0x5c] sm:$0xf]
  %v44 = vld [vmem:[%s1 + $0x60] sm:$0xf]
  %v45 = vld [vmem:[%s1 + $0x64] sm:$0xf]
  %v46 = vld [vmem:[%s1 + $0x68] sm:$0xf]
  %v47 = vld [vmem:[%s1 + $0x6c] sm:$0xf]
  %v48 = vld [vmem:[%s1 + $0x70] sm:$0xf]
  %v49 = vld [vmem:[%s1 + $0x74] sm:$0xf]
  %v50 = vld [vmem:[%s1 + $0x78] sm:$0xf]
  %v51 = vld [vmem:[%s1 + $0x7c] sm:$0xf]
  %v52 = vld [vmem:[%s1 + $0x80] sm:$0xf]
  %v53 = vld [vmem:[%s1 + $0x84] sm:$0xf]
  %v54 = vld [vmem:[%s1 + $0x88] sm:$0xf]
  %v55 = vld [vmem:[%s1 + $0x8c] sm:$0xf]
  %v56 = vld [vmem:[%s1 + $0x90] sm:$0xf]
  %v57 = vld [vmem:[%s1 + $0x94] sm:$0xf]
  %v58 = vld [vmem:[%s1 + $0x98] sm:$0xf]
  %v59 = vld [vmem:[%s1 + $0x9c] sm:$0xf]
  %v60 = vld [vmem:[%s1 + $0xa0] sm:$0xf]
  %v61 = vld [vmem:[%s1 + $0xa4] sm:$0xf]
  %v62 = vld [vmem:[%s1 + $0xa8] sm:$0xf]
  %v63 = vld [vmem:[%s1 + $0xac] sm:$0xf]
  %v64 = vld [vmem:[%s1 + $0xb0] sm:$0xf]
  %v65 = vld [vmem:[%s1 + $0xb4] sm:$0xf]
  %v66 = vld [vmem:[%s1 + $0xb8] sm:$0xf]
  %v67 = vld [vmem:[%s1 + $0xbc] sm:$0xf]
  %v68 = vld [vmem:[%s1 + $0xc0] sm:$0xf]
  %v69 = vld [vmem:[%s1 + $0xc4] sm:$0xf]
  %v70 = vld [vmem:[%s1 + $0xc8] sm:$0xf]
  %v71 = vld [vmem:[%s1 + $0xcc] sm:$0xf]
  %v72 = vld [vmem:[%s1 + $0xd0] sm:$0xf]
  %v73 = vld [vmem:[%s1 + $0xd4] sm:$0xf]
  %v74 = vld [vmem:[%s1 + $0xd8] sm:$0xf]
  %v75 = vld [vmem:[%s1 + $0xdc] sm:$0xf]
  %v76 = vld [vmem:[%s1 + $0xe0] sm:$0xf]
  %v77 = vld [vmem:[%s1 + $0xe4] sm:$0xf]
  %v78 = vld [vmem:[%s1 + $0xe8] sm:$0xf]
  %v79 = vld [vmem:[%s1 + $0xec] sm:$0xf]
  %v80 = vld [vmem:[%s1 + $0xf0] sm:$0xf]
  %v81 = vld [vmem:[%s1 + $0xf4] sm:$0xf]
  %v82 = vld [vmem:[%s1 + $0xf8] sm:$0xf]
  %v83 = vld [vmem:[%s1 + $0xfc] sm:$0xf]
  %v84 = vld [vmem:[%s1 + $0x100] sm:$0xf]
  %v85 = vld [vmem:[%s1 + $0x104] sm:$0xf]
  %v86 = vld [vmem:[%s1 + $0x108] sm:$0xf]
  %v87 = vld [vmem:[%s1 + $0x10c] sm:$0xf]
  %v88 = vld [vmem:[%s1 + $0x110] sm:$0xf]
  %v89 = vld [vmem:[%s1 + $0x114] sm:$0xf]
  %v90 = vld [vmem:[%s1 + $0x118] sm:$0xf]
  %v91 = vld [vmem:[%s1 + $0x11c] sm:$0xf]
  %v92 = vld [vmem:[%s1 + $0x120] sm:$0xf]
  %v93 = vld [vmem:[%s1 + $0x124] sm:$0xf]
  %v94 = vld [vmem:[%s1 + $0x128] sm:$0xf]
  %v95 = vld [vmem:[%s1 + $0x12c] sm:$0xf]
  %v96 = vld [vmem:[%s1 + $0x130] sm:$0xf]
  %v97 = vld [vmem:[%s1 + $0x134] sm:$0xf]
  %v98 = vld [vmem:[%s1 + $0x138] sm:$0xf]
  %v99 = vld [vmem:[%s1 + $0x13c] sm:$0xf]
  %v100 = vld [vmem:[%s1 + $0x140] sm:$0xf]
  %v101 = vld [vmem:[%s1 + $0x144] sm:$0xf]
  %v102 = vld [vmem:[%s1 + $0x148] sm:$0xf]
  %v103 = vld [vmem:[%s1 + $0x14c] sm:$0xf]
  %v104 = vld [vmem:[%s1 + $0x150] sm:$0xf]
  %v105 = vld [vmem:[%s1 + $0x154] sm:$0xf]
  %v106 = vld [vmem:[%s1 + $0x158] sm:$0xf]
  %v107 = vld [vmem:[%s1 + $0x15c] sm:$0xf]
  %v108 = vld [vmem:[%s1 + $0x160] sm:$0xf]
  %v109 = vld [vmem:[%s1 + $0x164] sm:$0xf]
  %v110 = vld [vmem:[%s1 + $0x168] sm:$0xf]
  %v111 = vld [vmem:[%s1 + $0x16c] sm:$0xf]
  %v112 = vld [vmem:[%s1 + $0x170] sm:$0xf]
  %v113 = vld [vmem:[%s1 + $0x174] sm:$0xf]
  %v114 = vld [vmem:[%s1 + $0x178] sm:$0xf]
  %v115 = vld [vmem:[%s1 + $0x17c] sm:$0xf]
  %v116 = vld [vmem:[%s1 + $0x180] sm:$0xf]
  %v117 = vld [vmem:[%s1 + $0x184] sm:$0xf]
  %v118 = vld [vmem:[%s1 + $0x188] sm:$0xf]
  %v119 = vld [vmem:[%s1 + $0x18c] sm:$0xf]
  %v120 = vld [vmem:[%s1 + $0x190] sm:$0xf]
  %v121 = vld [vmem:[%s1 + $0x194] sm:$0xf]
  %v122 = vld [vmem:[%s1 + $0x198] sm:$0xf]
  %v123 = vld [vmem:[%s1 + $0x19c] sm:$0xf]
  %v124 = vld [vmem:[%s1 + $0x1a0] sm:$0xf]
  %v125 = vld [vmem:[%s1 + $0x1a4] sm:$0xf]
  %v126 = vld [vmem:[%s1 + $0x1a8] sm:$0xf]
  %v127 = vld [vmem:[%s1 + $0x1ac] sm:$0xf]
  %v128 = vld [vmem:[%s1 + $0x1b0] sm:$0xf]
  %v129 = vld [vmem:[%s1 + $0x1b4] sm:$0xf]
  %v130 = vld [vmem:[%s1 + $0x1b8] sm:$0xf]
  %v131 = vld [vmem:[%s1 + $0x1bc] sm:$0xf]
  %v132 = vld [vmem:[%s1 + $0x1c0] sm:$0xf]
  %v133 = vld [vmem:[%s1 + $0x1c4] sm:$0xf]
  %v134 = vld [vmem:[%s1 + $0x1c8] sm:$0xf]
  %v135 = vld [vmem:[%s1 + $0x1cc] sm:$0xf]
  %v136 = vld [vmem:[%s1 + $0x1d0] sm:$0xf]
  %v137 = vld [vmem:[%s1 + $0x1d4] sm:$0xf]
  %v138 = vld [vmem:[%s1 + $0x1d8] sm:$0xf]
  %v139 = vld [vmem:[%s1 + $0x1dc] sm:$0xf]
  %v140 = vld [vmem:[%s1 + $0x1e0] sm:$0xf]
  %v141 = vld [vmem:[%s1 + $0x1e4] sm:$0xf]
  %v142 = vld [vmem:[%s1 + $0x1e8] sm:$0xf]
  %v143 = vld [vmem:[%s1 + $0x1ec] sm:$0xf]
  %v144 = vld [vmem:[%s1 + $0x1f0] sm:$0xf]
  %v145 = vld [vmem:[%s1 + $0x1f4] sm:$0xf]
  %v146 = vld [vmem:[%s1 + $0x1f8] sm:$0xf]
  %v147 = vld [vmem:[%s1 + $0x1fc] sm:$0xf]
  %v148 = vld [vmem:[%s1 + $0x200] sm:$0xf]
  %v149 = vld [vmem:[%s1 + $0x204] sm:$0xf]
  %v150 = vld [vmem:[%s1 + $0x208] sm:$0xf]
  %v151 = vld [vmem:[%s1 + $0x20c] sm:$0xf]
  %v152 = vld [vmem:[%s1 + $0x210] sm:$0xf]
  %v153 = vld [vmem:[%s1 + $0x214] sm:$0xf]
  %v154 = vld [vmem:[%s1 + $0x218] sm:$0xf]
  %v155 = vld [vmem:[%s1 + $0x21c] sm:$0xf]
  %v156 = vld [vmem:[%s1 + $0x220] sm:$0xf]
  %v157 = vld [vmem:[%s1 + $0x224] sm:$0xf]
  %v158 = vld [vmem:[%s1 + $0x228] sm:$0xf]
  %v159 = vld [vmem:[%s1 + $0x22c] sm:$0xf]
  %v160 = vld [vmem:[%s1 + $0x230] sm:$0xf]
  %v161 = vld [vmem:[%s1 + $0x234] sm:$0xf]
  %v162 = vld [vmem:[%s1 + $0x238] sm:$0xf]
  %v163 = vld [vmem:[%s1 + $0x23c] sm:$0xf]
  %v164 = vld [vmem:[%s2] sm:$0x1]
  %v166 = vlaneseq
  %v167 = vshrl.u32 %v166, 7
  %v168 = vsub.s32 0, %v167
  %v169 = vrot.slane %v164, %v168
  %v176 = vunpack.c.l.b16 %v15
  %v177 = vunpack.c.h.b16 %v15
  %v178 = vunpack.c.l.b16 %v16
  %v179 = vunpack.c.h.b16 %v16
  %v180 = vunpack.c.l.b16 %v17
  %v181 = vunpack.c.h.b16 %v17
  %v182 = vunpack.c.l.b16 %v18
  %v183 = vunpack.c.h.b16 %v18
  %v184 = vunpack.c.l.b16 %v19
  %v185 = vpack.c.b16 %v176, %v176
  %v186 = vpack.c.b16 %v177, %v177
  %v187 = vpack.c.b16 %v178, %v178
  %v188 = vpack.c.b16 %v179, %v179
  %v189 = vpack.c.b16 %v180, %v180
  %v190 = vpack.c.b16 %v181, %v181
  %v191 = vpack.c.b16 %v182, %v182
  %v192 = vpack.c.b16 %v183, %v183
  %v193 = vpack.c.b16 %v184, %v184
  %v347 = vunpack.c.l.b16 %v20
  %v348 = vunpack.c.l.b16 %v21
  %v349 = vunpack.c.l.b16 %v22
  %v350 = vunpack.c.l.b16 %v23
  %v351 = vunpack.c.l.b16 %v24
  %v352 = vunpack.c.l.b16 %v25
  %v353 = vunpack.c.l.b16 %v26
  %v354 = vunpack.c.l.b16 %v27
  %v355 = vunpack.c.l.b16 %v28
  %v356 = vunpack.c.l.b16 %v29
  %v357 = vunpack.c.l.b16 %v30
  %v358 = vunpack.c.l.b16 %v31
  %v359 = vunpack.c.l.b16 %v32
  %v360 = vunpack.c.l.b16 %v33
  %v361 = vunpack.c.l.b16 %v34
  %v362 = vunpack.c.l.b16 %v35
  %v363 = vunpack.c.l.b16 %v36
  %v364 = vunpack.c.l.b16 %v37
  %v365 = vunpack.c.l.b16 %v38
  %v366 = vunpack.c.l.b16 %v39
  %v367 = vunpack.c.l.b16 %v40
  %v368 = vunpack.c.l.b16 %v41
  %v369 = vunpack.c.l.b16 %v42
  %v370 = vunpack.c.l.b16 %v43
  %v371 = vunpack.c.l.b16 %v44
  %v372 = vunpack.c.l.b16 %v45
  %v373 = vunpack.c.l.b16 %v46
  %v374 = vunpack.c.l.b16 %v47
  %v375 = vunpack.c.l.b16 %v48
  %v376 = vunpack.c.l.b16 %v49
  %v377 = vunpack.c.l.b16 %v50
  %v378 = vunpack.c.l.b16 %v51
  %v379 = vunpack.c.l.b16 %v52
  %v380 = vunpack.c.l.b16 %v53
  %v381 = vunpack.c.l.b16 %v54
  %v382 = vunpack.c.l.b16 %v55
  %v383 = vunpack.c.l.b16 %v56
  %v384 = vunpack.c.l.b16 %v57
  %v385 = vunpack.c.l.b16 %v58
  %v386 = vunpack.c.l.b16 %v59
  %v387 = vunpack.c.l.b16 %v60
  %v388 = vunpack.c.l.b16 %v61
  %v389 = vunpack.c.l.b16 %v62
  %v390 = vunpack.c.l.b16 %v63
  %v391 = vunpack.c.l.b16 %v64
  %v392 = vunpack.c.l.b16 %v65
  %v393 = vunpack.c.l.b16 %v66
  %v394 = vunpack.c.l.b16 %v67
  %v395 = vunpack.c.l.b16 %v68
  %v396 = vunpack.c.l.b16 %v69
  %v397 = vunpack.c.l.b16 %v70
  %v398 = vunpack.c.l.b16 %v71
  %v399 = vunpack.c.l.b16 %v72
  %v400 = vunpack.c.l.b16 %v73
  %v401 = vunpack.c.l.b16 %v74
  %v402 = vunpack.c.l.b16 %v75
  %v403 = vunpack.c.l.b16 %v76
  %v404 = vunpack.c.l.b16 %v77
  %v405 = vunpack.c.l.b16 %v78
  %v406 = vunpack.c.l.b16 %v79
  %v407 = vunpack.c.l.b16 %v80
  %v408 = vunpack.c.l.b16 %v81
  %v409 = vunpack.c.l.b16 %v82
  %v410 = vunpack.c.l.b16 %v83
  %v411 = vunpack.c.l.b16 %v84
  %v412 = vunpack.c.l.b16 %v85
  %v413 = vunpack.c.l.b16 %v86
  %v414 = vunpack.c.l.b16 %v87
  %v415 = vunpack.c.l.b16 %v88
  %v416 = vunpack.c.l.b16 %v89
  %v417 = vunpack.c.l.b16 %v90
  %v418 = vunpack.c.l.b16 %v91
  %v419 = vunpack.c.l.b16 %v92
  %v420 = vunpack.c.l.b16 %v93
  %v421 = vunpack.c.l.b16 %v94
  %v422 = vunpack.c.l.b16 %v95
  %v423 = vunpack.c.l.b16 %v96
  %v424 = vunpack.c.l.b16 %v97
  %v425 = vunpack.c.l.b16 %v98
  %v426 = vunpack.c.l.b16 %v99
  %v427 = vunpack.c.l.b16 %v100
  %v428 = vunpack.c.l.b16 %v101
  %v429 = vunpack.c.l.b16 %v102
  %v430 = vunpack.c.l.b16 %v103
  %v431 = vunpack.c.l.b16 %v104
  %v432 = vunpack.c.l.b16 %v105
  %v433 = vunpack.c.l.b16 %v106
  %v434 = vunpack.c.l.b16 %v107
  %v435 = vunpack.c.l.b16 %v108
  %v436 = vunpack.c.l.b16 %v109
  %v437 = vunpack.c.l.b16 %v110
  %v438 = vunpack.c.l.b16 %v111
  %v439 = vunpack.c.l.b16 %v112
  %v440 = vunpack.c.l.b16 %v113
  %v441 = vunpack.c.l.b16 %v114
  %v442 = vunpack.c.l.b16 %v115
  %v443 = vunpack.c.l.b16 %v116
  %v444 = vunpack.c.l.b16 %v117
  %v445 = vunpack.c.l.b16 %v118
  %v446 = vunpack.c.l.b16 %v119
  %v447 = vunpack.c.l.b16 %v120
  %v448 = vunpack.c.l.b16 %v121
  %v449 = vunpack.c.l.b16 %v122
  %v450 = vunpack.c.l.b16 %v123
  %v451 = vunpack.c.l.b16 %v124
  %v452 = vunpack.c.l.b16 %v125
  %v453 = vunpack.c.l.b16 %v126
  %v454 = vunpack.c.l.b16 %v127
  %v455 = vunpack.c.l.b16 %v128
  %v456 = vunpack.c.l.b16 %v129
  %v457 = vunpack.c.l.b16 %v130
  %v458 = vunpack.c.l.b16 %v131
  %v459 = vunpack.c.l.b16 %v132
  %v460 = vunpack.c.l.b16 %v133
  %v461 = vunpack.c.l.b16 %v134
  %v462 = vunpack.c.l.b16 %v135
  %v463 = vunpack.c.l.b16 %v136
  %v464 = vunpack.c.l.b16 %v137
  %v465 = vunpack.c.l.b16 %v138
  %v466 = vunpack.c.l.b16 %v139
  %v467 = vunpack.c.l.b16 %v140
  %v468 = vunpack.c.l.b16 %v141
  %v469 = vunpack.c.l.b16 %v142
  %v470 = vunpack.c.l.b16 %v143
  %v471 = vunpack.c.l.b16 %v144
  %v472 = vunpack.c.l.b16 %v145
  %v473 = vunpack.c.l.b16 %v146
  %v474 = vunpack.c.l.b16 %v147
  %v475 = vunpack.c.l.b16 %v148
  %v476 = vunpack.c.l.b16 %v149
  %v477 = vunpack.c.l.b16 %v150
  %v478 = vunpack.c.l.b16 %v151
  %v479 = vunpack.c.l.b16 %v152
  %v480 = vunpack.c.l.b16 %v153
  %v481 = vunpack.c.l.b16 %v154
  %v482 = vunpack.c.l.b16 %v155
  %v483 = vunpack.c.l.b16 %v156
  %v484 = vunpack.c.l.b16 %v157
  %v485 = vunpack.c.l.b16 %v158
  %v486 = vunpack.c.l.b16 %v159
  %v487 = vunpack.c.l.b16 %v160
  %v488 = vunpack.c.l.b16 %v161
  %v489 = vunpack.c.l.b16 %v162
  %v490 = vunpack.c.l.b16 %v163
  %v491 = vpack.c.b16 %v348, %v347
  %v492 = vpack.c.b16 %v350, %v349
  %v493 = vpack.c.b16 %v352, %v351
  %v494 = vpack.c.b16 %v354, %v353
  %v495 = vpack.c.b16 %v356, %v355
  %v496 = vpack.c.b16 %v358, %v357
  %v497 = vpack.c.b16 %v360, %v359
  %v498 = vpack.c.b16 %v362, %v361
  %v499 = vpack.c.b16 %v364, %v363
  %v500 = vpack.c.b16 %v366, %v365
  %v501 = vpack.c.b16 %v368, %v367
  %v502 = vpack.c.b16 %v370, %v369
  %v503 = vpack.c.b16 %v372, %v371
  %v504 = vpack.c.b16 %v374, %v373
  %v505 = vpack.c.b16 %v376, %v375
  %v506 = vpack.c.b16 %v378, %v377
  %v507 = vpack.c.b16 %v380, %v379
  %v508 = vpack.c.b16 %v382, %v381
  %v509 = vpack.c.b16 %v384, %v383
  %v510 = vpack.c.b16 %v386, %v385
  %v511 = vpack.c.b16 %v388, %v387
  %v512 = vpack.c.b16 %v390, %v389
  %v513 = vpack.c.b16 %v392, %v391
  %v514 = vpack.c.b16 %v394, %v393
  %v515 = vpack.c.b16 %v396, %v395
  %v516 = vpack.c.b16 %v398, %v397
  %v517 = vpack.c.b16 %v400, %v399
  %v518 = vpack.c.b16 %v402, %v401
  %v519 = vpack.c.b16 %v404, %v403
  %v520 = vpack.c.b16 %v406, %v405
  %v521 = vpack.c.b16 %v408, %v407
  %v522 = vpack.c.b16 %v410, %v409
  %v523 = vpack.c.b16 %v412, %v411
  %v524 = vpack.c.b16 %v414, %v413
  %v525 = vpack.c.b16 %v416, %v415
  %v526 = vpack.c.b16 %v418, %v417
  %v527 = vpack.c.b16 %v420, %v419
  %v528 = vpack.c.b16 %v422, %v421
  %v529 = vpack.c.b16 %v424, %v423
  %v530 = vpack.c.b16 %v426, %v425
  %v531 = vpack.c.b16 %v428, %v427
  %v532 = vpack.c.b16 %v430, %v429
  %v533 = vpack.c.b16 %v432, %v431
  %v534 = vpack.c.b16 %v434, %v433
  %v535 = vpack.c.b16 %v436, %v435
  %v536 = vpack.c.b16 %v438, %v437
  %v537 = vpack.c.b16 %v440, %v439
  %v538 = vpack.c.b16 %v442, %v441
  %v539 = vpack.c.b16 %v444, %v443
  %v540 = vpack.c.b16 %v446, %v445
  %v541 = vpack.c.b16 %v448, %v447
  %v542 = vpack.c.b16 %v450, %v449
  %v543 = vpack.c.b16 %v452, %v451
  %v544 = vpack.c.b16 %v454, %v453
  %v545 = vpack.c.b16 %v456, %v455
  %v546 = vpack.c.b16 %v458, %v457
  %v547 = vpack.c.b16 %v460, %v459
  %v548 = vpack.c.b16 %v462, %v461
  %v549 = vpack.c.b16 %v464, %v463
  %v550 = vpack.c.b16 %v466, %v465
  %v551 = vpack.c.b16 %v468, %v467
  %v552 = vpack.c.b16 %v470, %v469
  %v553 = vpack.c.b16 %v472, %v471
  %v554 = vpack.c.b16 %v474, %v473
  %v555 = vpack.c.b16 %v476, %v475
  %v556 = vpack.c.b16 %v478, %v477
  %v557 = vpack.c.b16 %v480, %v479
  %v558 = vpack.c.b16 %v482, %v481
  %v559 = vpack.c.b16 %v484, %v483
  %v560 = vpack.c.b16 %v486, %v485
  %v561 = vpack.c.b16 %v488, %v487
  %v562 = vpack.c.b16 %v490, %v489
  %635 = vmatprep.subr.bf16.mxu0 0
  %636 = vmatpush1.bf16.msra.mxu0 %v498
  %637 = vmatprep.subr.bf16.mxu0 0
  %638 = vmatpush1.bf16.msra.mxu0 %v497
  %639 = vmatprep.subr.bf16.mxu0 0
  %640 = vmatpush1.bf16.msra.mxu0 %v496
  %641 = vmatprep.subr.bf16.mxu0 0
  %642 = vmatpush1.bf16.msra.mxu0 %v495
  %643 = vmatprep.subr.bf16.mxu0 0
  %644 = vmatpush1.bf16.msra.mxu0 %v494
  %645 = vmatprep.subr.bf16.mxu0 0
  %646 = vmatpush1.bf16.msra.mxu0 %v493
  %647 = vmatprep.subr.bf16.mxu0 0
  %648 = vmatpush1.bf16.msra.mxu0 %v492
  %649 = vmatprep.subr.bf16.mxu0 0
  %650 = vmatpush1.bf16.msra.mxu0 %v491
  %651 = vmatprep.subr.bf16.mxu0 0
  %652 = vmatpush2.bf16.msra.mxu0 %v506
  %653 = vmatprep.subr.bf16.mxu0 0
  %654 = vmatpush2.bf16.msra.mxu0 %v505
  %655 = vmatprep.subr.bf16.mxu0 0
  %656 = vmatpush2.bf16.msra.mxu0 %v504
  %657 = vmatprep.subr.bf16.mxu0 0
  %658 = vmatpush2.bf16.msra.mxu0 %v503
  %659 = vmatprep.subr.bf16.mxu0 0
  %660 = vmatpush2.bf16.msra.mxu0 %v502
  %661 = vmatprep.subr.bf16.mxu0 0
  %662 = vmatpush2.bf16.msra.mxu0 %v501
  %663 = vmatprep.subr.bf16.mxu0 0
  %664 = vmatpush2.bf16.msra.mxu0 %v500
  %665 = vmatprep.subr.bf16.mxu0 0
  %666 = vmatpush2.bf16.msra.mxu0 %v499
  %667 = vmatprep.mubr.bf16.mxu0 %v186
  %668 = vmatmul.mubr.bf16.gmra.mxu0 %v185
  %v669 = vpop.f32.mrf.mxu0
  %v670 = vadd.f32 %v169, %v669
  %v671 = vpop.f32.mrf.mxu0
  %v672 = vpop.f32.mrf.mxu0
  %v673 = vpop.f32.mrf.mxu0
  %674 = vdwg.mxu0
  %675 = vmatprep.subr.bf16.mxu0 0
  %676 = vmatpush1.bf16.msra.mxu0 %v514
  %677 = vmatprep.subr.bf16.mxu0 0
  %678 = vmatpush1.bf16.msra.mxu0 %v513
  %679 = vmatprep.subr.bf16.mxu0 0
  %680 = vmatpush1.bf16.msra.mxu0 %v512
  %681 = vmatprep.subr.bf16.mxu0 0
  %682 = vmatpush1.bf16.msra.mxu0 %v511
  %683 = vmatprep.subr.bf16.mxu0 0
  %684 = vmatpush1.bf16.msra.mxu0 %v510
  %685 = vmatprep.subr.bf16.mxu0 0
  %686 = vmatpush1.bf16.msra.mxu0 %v509
  %687 = vmatprep.subr.bf16.mxu0 0
  %688 = vmatpush1.bf16.msra.mxu0 %v508
  %689 = vmatprep.subr.bf16.mxu0 0
  %690 = vmatpush1.bf16.msra.mxu0 %v507
  %691 = vmatprep.subr.bf16.mxu0 0
  %692 = vmatpush2.bf16.msra.mxu0 %v522
  %693 = vmatprep.subr.bf16.mxu0 0
  %694 = vmatpush2.bf16.msra.mxu0 %v521
  %695 = vmatprep.subr.bf16.mxu0 0
  %696 = vmatpush2.bf16.msra.mxu0 %v520
  %697 = vmatprep.subr.bf16.mxu0 0
  %698 = vmatpush2.bf16.msra.mxu0 %v519
  %699 = vmatprep.subr.bf16.mxu0 0
  %700 = vmatpush2.bf16.msra.mxu0 %v518
  %701 = vmatprep.subr.bf16.mxu0 0
  %702 = vmatpush2.bf16.msra.mxu0 %v517
  %703 = vmatprep.subr.bf16.mxu0 0
  %704 = vmatpush2.bf16.msra.mxu0 %v516
  %705 = vmatprep.subr.bf16.mxu0 0
  %706 = vmatpush2.bf16.msra.mxu0 %v515
  %707 = vmatprep.mubr.bf16.mxu0 %v188
  %708 = vmatmul.mubr.bf16.gmra.mxu0 %v187
  %v709 = vpop.f32.mrf.mxu0
  %v710 = vadd.f32 %v670, %v709
  %v711 = vpop.f32.mrf.mxu0
  %v712 = vpop.f32.mrf.mxu0
  %v713 = vpop.f32.mrf.mxu0
  %714 = vdwg.mxu0
  %715 = vmatprep.subr.bf16.mxu0 0
  %716 = vmatpush1.bf16.msra.mxu0 %v530
  %717 = vmatprep.subr.bf16.mxu0 0
  %718 = vmatpush1.bf16.msra.mxu0 %v529
  %719 = vmatprep.subr.bf16.mxu0 0
  %720 = vmatpush1.bf16.msra.mxu0 %v528
  %721 = vmatprep.subr.bf16.mxu0 0
  %722 = vmatpush1.bf16.msra.mxu0 %v527
  %723 = vmatprep.subr.bf16.mxu0 0
  %724 = vmatpush1.bf16.msra.mxu0 %v526
  %725 = vmatprep.subr.bf16.mxu0 0
  %726 = vmatpush1.bf16.msra.mxu0 %v525
  %727 = vmatprep.subr.bf16.mxu0 0
  %728 = vmatpush1.bf16.msra.mxu0 %v524
  %729 = vmatprep.subr.bf16.mxu0 0
  %730 = vmatpush1.bf16.msra.mxu0 %v523
  %731 = vmatprep.subr.bf16.mxu0 0
  %732 = vmatpush2.bf16.msra.mxu0 %v538
  %733 = vmatprep.subr.bf16.mxu0 0
  %734 = vmatpush2.bf16.msra.mxu0 %v537
  %735 = vmatprep.subr.bf16.mxu0 0
  %736 = vmatpush2.bf16.msra.mxu0 %v536
  %737 = vmatprep.subr.bf16.mxu0 0
  %738 = vmatpush2.bf16.msra.mxu0 %v535
  %739 = vmatprep.subr.bf16.mxu0 0
  %740 = vmatpush2.bf16.msra.mxu0 %v534
  %741 = vmatprep.subr.bf16.mxu0 0
  %742 = vmatpush2.bf16.msra.mxu0 %v533
  %743 = vmatprep.subr.bf16.mxu0 0
  %744 = vmatpush2.bf16.msra.mxu0 %v532
  %745 = vmatprep.subr.bf16.mxu0 0
  %746 = vmatpush2.bf16.msra.mxu0 %v531
  %747 = vmatprep.mubr.bf16.mxu0 %v190
  %748 = vmatmul.mubr.bf16.gmra.mxu0 %v189
  %v749 = vpop.f32.mrf.mxu0
  %v750 = vadd.f32 %v710, %v749
  %v751 = vpop.f32.mrf.mxu0
  %v752 = vpop.f32.mrf.mxu0
  %v753 = vpop.f32.mrf.mxu0
  %754 = vdwg.mxu0
  %755 = vmatprep.subr.bf16.mxu0 0
  %756 = vmatpush1.bf16.msra.mxu0 %v546
  %757 = vmatprep.subr.bf16.mxu0 0
  %758 = vmatpush1.bf16.msra.mxu0 %v545
  %759 = vmatprep.subr.bf16.mxu0 0
  %760 = vmatpush1.bf16.msra.mxu0 %v544
  %761 = vmatprep.subr.bf16.mxu0 0
  %762 = vmatpush1.bf16.msra.mxu0 %v543
  %763 = vmatprep.subr.bf16.mxu0 0
  %764 = vmatpush1.bf16.msra.mxu0 %v542
  %765 = vmatprep.subr.bf16.mxu0 0
  %766 = vmatpush1.bf16.msra.mxu0 %v541
  %767 = vmatprep.subr.bf16.mxu0 0
  %768 = vmatpush1.bf16.msra.mxu0 %v540
  %769 = vmatprep.subr.bf16.mxu0 0
  %770 = vmatpush1.bf16.msra.mxu0 %v539
  %771 = vmatprep.subr.bf16.mxu0 0
  %772 = vmatpush2.bf16.msra.mxu0 %v554
  %773 = vmatprep.subr.bf16.mxu0 0
  %774 = vmatpush2.bf16.msra.mxu0 %v553
  %775 = vmatprep.subr.bf16.mxu0 0
  %776 = vmatpush2.bf16.msra.mxu0 %v552
  %777 = vmatprep.subr.bf16.mxu0 0
  %778 = vmatpush2.bf16.msra.mxu0 %v551
  %779 = vmatprep.subr.bf16.mxu0 0
  %780 = vmatpush2.bf16.msra.mxu0 %v550
  %781 = vmatprep.subr.bf16.mxu0 0
  %782 = vmatpush2.bf16.msra.mxu0 %v549
  %783 = vmatprep.subr.bf16.mxu0 0
  %784 = vmatpush2.bf16.msra.mxu0 %v548
  %785 = vmatprep.subr.bf16.mxu0 0
  %786 = vmatpush2.bf16.msra.mxu0 %v547
  %787 = vmatprep.mubr.bf16.mxu0 %v192
  %788 = vmatmul.mubr.bf16.gmra.mxu0 %v191
  %v789 = vpop.f32.mrf.mxu0
  %v790 = vadd.f32 %v750, %v789
  %v791 = vpop.f32.mrf.mxu0
  %v792 = vpop.f32.mrf.mxu0
  %v793 = vpop.f32.mrf.mxu0
  %794 = vdwg.mxu0
  %795 = vmatprep.subr.bf16.mxu0 0
  %796 = vmatpush1.bf16.msra.mxu0 %v562
  %797 = vmatprep.subr.bf16.mxu0 0
  %798 = vmatpush1.bf16.msra.mxu0 %v561
  %799 = vmatprep.subr.bf16.mxu0 0
  %800 = vmatpush1.bf16.msra.mxu0 %v560
  %801 = vmatprep.subr.bf16.mxu0 0
  %802 = vmatpush1.bf16.msra.mxu0 %v559
  %803 = vmatprep.subr.bf16.mxu0 0
  %804 = vmatpush1.bf16.msra.mxu0 %v558
  %805 = vmatprep.subr.bf16.mxu0 0
  %806 = vmatpush1.bf16.msra.mxu0 %v557
  %807 = vmatprep.subr.bf16.mxu0 0
  %808 = vmatpush1.bf16.msra.mxu0 %v556
  %809 = vmatprep.subr.bf16.mxu0 0
  %810 = vmatpush1.bf16.msra.mxu0 %v555
  %811 = vmatprep.subr.bf16.mxu0 0
  %812 = vmatpush2.bf16.msra.mxu0 0
  %813 = vmatprep.subr.bf16.mxu0 0
  %814 = vmatpush2.bf16.msra.mxu0 0
  %815 = vmatprep.subr.bf16.mxu0 0
  %816 = vmatpush2.bf16.msra.mxu0 0
  %817 = vmatprep.subr.bf16.mxu0 0
  %818 = vmatpush2.bf16.msra.mxu0 0
  %819 = vmatprep.subr.bf16.mxu0 0
  %820 = vmatpush2.bf16.msra.mxu0 0
  %821 = vmatprep.subr.bf16.mxu0 0
  %822 = vmatpush2.bf16.msra.mxu0 0
  %823 = vmatprep.subr.bf16.mxu0 0
  %824 = vmatpush2.bf16.msra.mxu0 0
  %825 = vmatprep.subr.bf16.mxu0 0
  %826 = vmatpush2.bf16.msra.mxu0 0
  %827 = vmatprep.mubr.bf16.mxu0 0
  %828 = vmatmul.mubr.bf16.gmra.mxu0 %v193
  %v829 = vpop.f32.mrf.mxu0
  %v830 = vadd.f32 %v790, %v829
  %v831 = vpop.f32.mrf.mxu0
  %v832 = vpop.f32.mrf.mxu0
  %v833 = vpop.f32.mrf.mxu0
  %834 = vdwg.mxu0
  %v835 = vmax.f32 %v830, 0.0
  %v836 = vpack.c.bf16 %v835, %v835
  %837 = vst [vmem:[%s3] sm:$0xf] %v836
  // Predicated region
  $region14: #{cnn_classifier_forward.14} parent=0 // pred_check
    _
  $region15: #{cnn_classifier_forward.14} parent=0 // pred_check_branch
    %839 = sbr.rel (0) target = $region17
  $region16: #{cnn_classifier_forward.14} parent=0 // pred_region
    _
  $region17: #{cnn_classifier_forward.14} parent=0 // pred_fallthru
    _
  // Predicated region
  $region18: #{cnn_classifier_forward.14} parent=0 // pred_check
    _
  $region19: #{cnn_classifier_forward.14} parent=0 // pred_check_branch
    %841 = sbr.rel (0) target = $region21
  $region20: #{cnn_classifier_forward.14} parent=0 // pred_region
    _
  $region21: #{cnn_classifier_forward.14} parent=0 // pred_fallthru
    _

</llo_original>
